<compile_context>
chip_gen: v6e
topology: v6e:2x2x1
jax: 0.10.0
libtpu: 0.0.40
codegen_flags: <defaults>
</compile_context>

<pallas_src>
import functools
import math

import jax
import jax.numpy as jnp
import numpy as np
from jax import lax
from jax.experimental import pallas as pl
from jax.experimental.pallas import tpu as pltpu

NUM_BUCKETS = 32
MAX_DISTANCE = 128


def _rel_bias_kernel(emb_ref, out_ref, *, tq, tk, is_bidirectional):
    """emb_ref: (H, NUM_BUCKETS) f32 VMEM (resident); out_ref: (H, tq, tk) f32 tile."""
    shape = out_ref.shape

    q_off = pl.program_id(0) * tq
    k_off = pl.program_id(1) * tk

    # Scalar bounds of rel = memory_position - query_position over this tile.
    rel_min = k_off - (q_off + tq - 1)
    rel_max = (k_off + tk - 1) - q_off

    nb = NUM_BUCKETS // 2 if is_bidirectional else NUM_BUCKETS
    max_exact = nb // 2

    # Regions where the bucket is constant over the whole tile -> broadcast store.
    if is_bidirectional:
        pos_thresh = MAX_DISTANCE            # rel >= 128  -> bucket NUM_BUCKETS-1
        pos_bucket = NUM_BUCKETS - 1
        neg_bucket = nb - 1                  # rel <= -128 -> bucket nb-1
    else:
        pos_thresh = 0                       # rel >= 0    -> bucket 0
        pos_bucket = 0
        neg_bucket = NUM_BUCKETS - 1         # rel <= -128 -> bucket NUM_BUCKETS-1

    sat_pos = rel_min >= pos_thresh
    sat_neg = rel_max <= -MAX_DISTANCE
    in_band = jnp.logical_and(rel_min < pos_thresh, rel_max > -MAX_DISTANCE)

    def _bcast_col(b):
        col = emb_ref[...][:, b][:, None, None]          # (H, 1, 1)
        return jnp.broadcast_to(col, shape)

    @pl.when(sat_pos)
    def _():
        out_ref[...] = _bcast_col(pos_bucket)

    @pl.when(sat_neg)
    def _():
        out_ref[...] = _bcast_col(neg_bucket)

    @pl.when(in_band)
    def _():
        # Per-position quantities computed once at (tq, tk) — no div/mod.
        qq = lax.broadcasted_iota(jnp.int32, (tq, tk), 0)
        kk = lax.broadcasted_iota(jnp.int32, (tq, tk), 1)
        rel = (k_off + kk) - (q_off + qq)

        buckets = jnp.zeros((tq, tk), jnp.int32)
        if is_bidirectional:
            buckets = buckets + (rel > 0).astype(jnp.int32) * nb
            rel_mag = jnp.abs(rel)
        else:
            rel_mag = jnp.maximum(-rel, 0)

        is_small = rel_mag < max_exact

        if is_bidirectional:
            # With the default constants (max_exact=8, max_distance=128):
            #   large = 8 + floor(2*log2(rel/8)) = 2 + floor(log2(rel^2))
            # i.e. exactly the f32 exponent field of rel^2 (no log, no divide;
            # bit-exact w.r.t. the reference bucketing).
            rel_f = rel_mag.astype(jnp.float32)
            rel_sq = jnp.maximum(rel_f * rel_f, 1.0)     # masked lanes: avoid exp(0.0)
            exp2 = (pltpu.bitcast(rel_sq, jnp.int32) >> 23) - 127
            large = 2 + exp2
        else:
            # Causal constants give a non-integer log2 multiple; keep the log
            # form (same op order as the reference; no exact interior
            # boundaries so an ulp of log error cannot flip a bucket).
            rel_f = jnp.maximum(rel_mag.astype(jnp.float32), 1.0)
            large = max_exact + (
                jnp.log(rel_f / max_exact)
                / math.log(MAX_DISTANCE / max_exact)
                * (nb - max_exact)
            ).astype(jnp.int32)                          # truncation, like .to(long)

        large = jnp.minimum(large, nb - 1)
        buckets = buckets + jnp.where(is_small, rel_mag, large)   # (tq, tk)

        # Gather emb[:, bucket] as a 32-way select chain (H is small, so a
        # one-hot MXU matmul would only waste VMEM on a 32x-larger onehot).
        emb = emb_ref[...]                               # (H, NUM_BUCKETS)
        acc = jnp.broadcast_to(emb[:, 0][:, None, None], shape)
        for b in range(1, NUM_BUCKETS):
            col = jnp.broadcast_to(emb[:, b][:, None, None], shape)
            acc = jnp.where((buckets == b)[None, :, :], col, acc)
        out_ref[...] = acc


def _choose_tile(dim, max_tile, align):
    """Largest `align`-aligned divisor of `dim` that is <= max_tile; else full dim."""
    if dim <= max_tile:
        return dim
    t = (max_tile // align) * align
    while t >= align:
        if dim % t == 0:
            return t
        t -= align
    return dim  # TODO(synk): ragged remainder tiles for dims with no aligned divisor


def shared_relative_attention_bias(rel_emb, T_k, T_q, is_bidirectional,
                                   *, tq_max=128, tk_max=512):
    """Equivalent of SharedRelativeAttentionBias.forward(T_k, T_q) -> (H, T_q, T_k)."""
    H = rel_emb.shape[0]
    tq = _choose_tile(T_q, tq_max, 8)      # sublane-aligned q tiles
    tk = _choose_tile(T_k, tk_max, 128)    # lane-aligned k tiles (unmasked stores)
    grid = (T_q // tq, T_k // tk)

    return pl.pallas_call(
        functools.partial(_rel_bias_kernel, tq=tq, tk=tk,
                          is_bidirectional=is_bidirectional),
        out_shape=jax.ShapeDtypeStruct((H, T_q, T_k), jnp.float32),
        grid=grid,
        in_specs=[pl.BlockSpec((H, NUM_BUCKETS), lambda qi, ki: (0, 0))],
        out_specs=pl.BlockSpec((H, tq, tk), lambda qi, ki: (0, qi, ki)),
        compiler_params=pltpu.CompilerParams(
            dimension_semantics=("parallel", "parallel")),
    )(rel_emb)


def _ref_bias(emb, T_k, T_q, is_bidirectional,
              num_buckets=NUM_BUCKETS, max_distance=MAX_DISTANCE):
    """NumPy reference replicating the PyTorch module exactly."""
    mem = np.arange(T_k).reshape(1, -1)
    qp = np.arange(T_q).reshape(-1, 1)
    rel = mem - qp
    nb = num_buckets
    rb = np.zeros_like(rel)
    if is_bidirectional:
        nb //= 2
        rb = rb + (rel > 0).astype(np.int64) * nb
        rel = np.abs(rel)
    else:
        rel = -np.minimum(rel, 0)
    max_exact = nb // 2
    is_small = rel < max_exact
    rel_f = np.maximum(rel.astype(np.float32), 1.0)
    large = max_exact + (
        np.log(rel_f / max_exact) / math.log(max_distance / max_exact) * (nb - max_exact)
    ).astype(np.int64)
    large = np.minimum(large, nb - 1)
    bucket = rb + np.where(is_small, rel, large)
    return emb[:, bucket]  # (H, T_q, T_k)


if __name__ == "__main__":
    num_heads = 8

    # Deterministic parameter init mirroring
    # kaiming_normal_((H, 32), nonlinearity='linear') -> std = 1/sqrt(fan_in=32)
    key = jax.random.PRNGKey(0)
    rel_emb = jax.random.normal(
        key, (num_heads, NUM_BUCKETS), dtype=jnp.float32) / math.sqrt(NUM_BUCKETS)

    # Small shapes (single-block) + a moderate shape that exercises the tiled
    # grid, the in-band path, and both saturated fast paths.
    for (T_q, T_k) in [(8, 16), (640, 640)]:
        for is_bidir in (True, False):
            out = jax.block_until_ready(
                shared_relative_attention_bias(rel_emb, T_k, T_q, is_bidir))
            assert out.shape == (num_heads, T_q, T_k)
            assert out.dtype == jnp.float32
            ref = _ref_bias(np.asarray(rel_emb), T_k, T_q, is_bidir)
            np.testing.assert_allclose(np.asarray(out), ref, rtol=1e-6, atol=1e-6)

    print("KERNEL_OK")
</pallas_src>

<mosaic_0001>
module attributes {stable_mosaic.version = 11 : i64} {
  func.func @_rel_bias_kernel(%arg0: i32, %arg1: i32, %arg2: memref<8x32xf32, #tpu.memory_space<vmem>>, %arg3: memref<8x8x16xf32, #tpu.memory_space<vmem>>) attributes {dimension_semantics = [#tpu.dimension_semantics<parallel>, #tpu.dimension_semantics<parallel>], iteration_bounds = array<i64: 1, 1>, scalar_prefetch = 0 : i64, scratch_operands = 0 : i64, tpu.core_type = #tpu.core_type<tc>, window_params = [{pipeline_mode = #tpu.pipeline_mode<synchronous>, transform_indices = @transform_0, window_bounds = array<i64: 8, 32>}, {transform_indices = @transform_1, window_bounds = array<i64: 8, 8, 16>}]} {
    %c8_i32 = arith.constant 8 : i32
    %0 = arith.muli %arg0, %c8_i32 : i32
    %c16_i32 = arith.constant 16 : i32
    %1 = arith.muli %arg1, %c16_i32 : i32
    %c8_i32_0 = arith.constant 8 : i32
    %2 = arith.addi %0, %c8_i32_0 : i32
    %c1_i32 = arith.constant 1 : i32
    %3 = arith.subi %2, %c1_i32 : i32
    %4 = arith.subi %1, %3 : i32
    %c16_i32_1 = arith.constant 16 : i32
    %5 = arith.addi %1, %c16_i32_1 : i32
    %c1_i32_2 = arith.constant 1 : i32
    %6 = arith.subi %5, %c1_i32_2 : i32
    %7 = arith.subi %6, %0 : i32
    %c128_i32 = arith.constant 128 : i32
    %8 = arith.cmpi sge, %4, %c128_i32 : i32
    %c-128_i32 = arith.constant -128 : i32
    %9 = arith.cmpi sle, %7, %c-128_i32 : i32
    %c128_i32_3 = arith.constant 128 : i32
    %10 = arith.cmpi slt, %4, %c128_i32_3 : i32
    %c-128_i32_4 = arith.constant -128 : i32
    %11 = arith.cmpi sgt, %7, %c-128_i32_4 : i32
    %12 = arith.andi %10, %11 : i1
    %13 = arith.extui %8 : i1 to i32
    %c0_i32 = arith.constant 0 : i32
    %14 = arith.cmpi ne, %13, %c0_i32 : i32
    scf.if %14 {
      %c0 = arith.constant 0 : index
      %c0_7 = arith.constant 0 : index
      %19 = vector.load %arg2[%c0, %c0_7] : memref<8x32xf32, #tpu.memory_space<vmem>>, vector<8x32xf32>
      %20 = vector.extract_strided_slice %19 {offsets = [0, 31], sizes = [8, 1], strides = [1, 1]} : vector<8x32xf32> to vector<8x1xf32>
      %21 = vector.shape_cast %20 : vector<8x1xf32> to vector<8xf32>
      %22 = vector.shape_cast %21 : vector<8xf32> to vector<8x1x1xf32>
      %23 = vector.shape_cast %22 : vector<8x1x1xf32> to vector<8x1x1xf32>
      %24 = vector.broadcast %23 : vector<8x1x1xf32> to vector<8x8x16xf32>
      %c0_8 = arith.constant 0 : index
      %c0_9 = arith.constant 0 : index
      %c0_10 = arith.constant 0 : index
      %25 = vector.load %arg3[%c0_8, %c0_9, %c0_10] : memref<8x8x16xf32, #tpu.memory_space<vmem>>, vector<8x8x16xf32>
      tpu.vector_store %arg3[%c0_8, %c0_9, %c0_10], %24 {strides = array<i32>} : memref<8x8x16xf32, #tpu.memory_space<vmem>>, vector<8x8x16xf32>,
    } else {
    }
    %15 = arith.extui %9 : i1 to i32
    %c0_i32_5 = arith.constant 0 : i32
    %16 = arith.cmpi ne, %15, %c0_i32_5 : i32
    scf.if %16 {
      %c0 = arith.constant 0 : index
      %c0_7 = arith.constant 0 : index
      %19 = vector.load %arg2[%c0, %c0_7] : memref<8x32xf32, #tpu.memory_space<vmem>>, vector<8x32xf32>
      %20 = vector.extract_strided_slice %19 {offsets = [0, 15], sizes = [8, 1], strides = [1, 1]} : vector<8x32xf32> to vector<8x1xf32>
      %21 = vector.shape_cast %20 : vector<8x1xf32> to vector<8xf32>
      %22 = vector.shape_cast %21 : vector<8xf32> to vector<8x1x1xf32>
      %23 = vector.shape_cast %22 : vector<8x1x1xf32> to vector<8x1x1xf32>
      %24 = vector.broadcast %23 : vector<8x1x1xf32> to vector<8x8x16xf32>
      %c0_8 = arith.constant 0 : index
      %c0_9 = arith.constant 0 : index
      %c0_10 = arith.constant 0 : index
      %25 = vector.load %arg3[%c0_8, %c0_9, %c0_10] : memref<8x8x16xf32, #tpu.memory_space<vmem>>, vector<8x8x16xf32>
      tpu.vector_store %arg3[%c0_8, %c0_9, %c0_10], %24 {strides = array<i32>} : memref<8x8x16xf32, #tpu.memory_space<vmem>>, vector<8x8x16xf32>,
    } else {
    }
    %17 = arith.extui %12 : i1 to i32
    %c0_i32_6 = arith.constant 0 : i32
    %18 = arith.cmpi ne, %17, %c0_i32_6 : i32
    scf.if %18 {
      %19 = tpu.iota {dimensions = array<i32: 0>} : vector<8x16xi32>
      %20 = tpu.iota {dimensions = array<i32: 1>} : vector<8x16xi32>
      %21 = vector.broadcast %1 : i32 to vector<8x16xi32>
      %22 = arith.addi %21, %20 : vector<8x16xi32>
      %23 = vector.broadcast %0 : i32 to vector<8x16xi32>
      %24 = arith.addi %23, %19 : vector<8x16xi32>
      %25 = arith.subi %22, %24 : vector<8x16xi32>
      %c0_i32_7 = arith.constant 0 : i32
      %26 = vector.broadcast %c0_i32_7 : i32 to vector<8x16xi32>
      %c0_i32_8 = arith.constant 0 : i32
      %27 = vector.broadcast %c0_i32_8 : i32 to vector<8x16xi32>
      %28 = arith.cmpi sgt, %25, %27 : vector<8x16xi32>
      %29 = arith.extui %28 : vector<8x16xi1> to vector<8x16xi32>
      %c16_i32_9 = arith.constant 16 : i32
      %30 = vector.broadcast %c16_i32_9 : i32 to vector<8x16xi32>
      %31 = arith.muli %29, %30 : vector<8x16xi32>
      %32 = arith.addi %26, %31 : vector<8x16xi32>
      %33 = math.absi %25 : vector<8x16xi32>
      %c8_i32_10 = arith.constant 8 : i32
      %34 = vector.broadcast %c8_i32_10 : i32 to vector<8x16xi32>
      %35 = arith.cmpi slt, %33, %34 : vector<8x16xi32>
      %36 = arith.sitofp %33 : vector<8x16xi32> to vector<8x16xf32>
      %37 = arith.mulf %36, %36 : vector<8x16xf32>
      %cst = arith.constant 1.000000e+00 : f32
      %38 = vector.broadcast %cst : f32 to vector<8x16xf32>
      %39 = arith.maximumf %37, %38 : vector<8x16xf32>
      %40 = tpu.bitcast %39 : vector<8x16xf32> -> vector<8x16xi32>
      %c23_i32 = arith.constant 23 : i32
      %41 = vector.broadcast %c23_i32 : i32 to vector<8x16xi32>
      %42 = arith.shrsi %40, %41 : vector<8x16xi32>
      %c127_i32 = arith.constant 127 : i32
      %43 = vector.broadcast %c127_i32 : i32 to vector<8x16xi32>
      %44 = arith.subi %42, %43 : vector<8x16xi32>
      %c2_i32 = arith.constant 2 : i32
      %45 = vector.broadcast %c2_i32 : i32 to vector<8x16xi32>
      %46 = arith.addi %45, %44 : vector<8x16xi32>
      %c15_i32 = arith.constant 15 : i32
      %47 = vector.broadcast %c15_i32 : i32 to vector<8x16xi32>
      %48 = arith.minsi %46, %47 : vector<8x16xi32>
      %49 = arith.select %35, %33, %48 : vector<8x16xi1>, vector<8x16xi32>
      %50 = arith.addi %32, %49 : vector<8x16xi32>
      %c0 = arith.constant 0 : index
      %c0_11 = arith.constant 0 : index
      %51 = vector.load %arg2[%c0, %c0_11] : memref<8x32xf32, #tpu.memory_space<vmem>>, vector<8x32xf32>
      %52 = vector.extract_strided_slice %51 {offsets = [0, 0], sizes = [8, 1], strides = [1, 1]} : vector<8x32xf32> to vector<8x1xf32>
      %53 = vector.shape_cast %52 : vector<8x1xf32> to vector<8xf32>
      %54 = vector.shape_cast %53 : vector<8xf32> to vector<8x1x1xf32>
      %55 = vector.shape_cast %54 : vector<8x1x1xf32> to vector<8x1x1xf32>
      %56 = vector.broadcast %55 : vector<8x1x1xf32> to vector<8x8x16xf32>
      %57 = vector.extract_strided_slice %51 {offsets = [0, 1], sizes = [8, 1], strides = [1, 1]} : vector<8x32xf32> to vector<8x1xf32>
      %58 = vector.shape_cast %57 : vector<8x1xf32> to vector<8xf32>
      %59 = vector.shape_cast %58 : vector<8xf32> to vector<8x1x1xf32>
      %60 = vector.shape_cast %59 : vector<8x1x1xf32> to vector<8x1x1xf32>
      %61 = vector.broadcast %60 : vector<8x1x1xf32> to vector<8x8x16xf32>
      %c1_i32_12 = arith.constant 1 : i32
      %62 = vector.broadcast %c1_i32_12 : i32 to vector<8x16xi32>
      %63 = arith.cmpi eq, %50, %62 : vector<8x16xi32>
      %64 = vector.shape_cast %63 : vector<8x16xi1> to vector<1x8x16xi1>
      %65 = vector.shape_cast %64 : vector<1x8x16xi1> to vector<1x8x16xi1>
      %66 = vector.broadcast %65 : vector<1x8x16xi1> to vector<8x8x16xi1>
      %67 = arith.select %66, %61, %56 : vector<8x8x16xi1>, vector<8x8x16xf32>
      %68 = vector.extract_strided_slice %51 {offsets = [0, 2], sizes = [8, 1], strides = [1, 1]} : vector<8x32xf32> to vector<8x1xf32>
      %69 = vector.shape_cast %68 : vector<8x1xf32> to vector<8xf32>
      %70 = vector.shape_cast %69 : vector<8xf32> to vector<8x1x1xf32>
      %71 = vector.shape_cast %70 : vector<8x1x1xf32> to vector<8x1x1xf32>
      %72 = vector.broadcast %71 : vector<8x1x1xf32> to vector<8x8x16xf32>
      %c2_i32_13 = arith.constant 2 : i32
      %73 = vector.broadcast %c2_i32_13 : i32 to vector<8x16xi32>
      %74 = arith.cmpi eq, %50, %73 : vector<8x16xi32>
      %75 = vector.shape_cast %74 : vector<8x16xi1> to vector<1x8x16xi1>
      %76 = vector.shape_cast %75 : vector<1x8x16xi1> to vector<1x8x16xi1>
      %77 = vector.broadcast %76 : vector<1x8x16xi1> to vector<8x8x16xi1>
      %78 = arith.select %77, %72, %67 : vector<8x8x16xi1>, vector<8x8x16xf32>
      %79 = vector.extract_strided_slice %51 {offsets = [0, 3], sizes = [8, 1], strides = [1, 1]} : vector<8x32xf32> to vector<8x1xf32>
      %80 = vector.shape_cast %79 : vector<8x1xf32> to vector<8xf32>
      %81 = vector.shape_cast %80 : vector<8xf32> to vector<8x1x1xf32>
      %82 = vector.shape_cast %81 : vector<8x1x1xf32> to vector<8x1x1xf32>
      %83 = vector.broadcast %82 : vector<8x1x1xf32> to vector<8x8x16xf32>
      %c3_i32 = arith.constant 3 : i32
      %84 = vector.broadcast %c3_i32 : i32 to vector<8x16xi32>
      %85 = arith.cmpi eq, %50, %84 : vector<8x16xi32>
      %86 = vector.shape_cast %85 : vector<8x16xi1> to vector<1x8x16xi1>
      %87 = vector.shape_cast %86 : vector<1x8x16xi1> to vector<1x8x16xi1>
      %88 = vector.broadcast %87 : vector<1x8x16xi1> to vector<8x8x16xi1>
      %89 = arith.select %88, %83, %78 : vector<8x8x16xi1>, vector<8x8x16xf32>
      %90 = vector.extract_strided_slice %51 {offsets = [0, 4], sizes = [8, 1], strides = [1, 1]} : vector<8x32xf32> to vector<8x1xf32>
      %91 = vector.shape_cast %90 : vector<8x1xf32> to vector<8xf32>
      %92 = vector.shape_cast %91 : vector<8xf32> to vector<8x1x1xf32>
      %93 = vector.shape_cast %92 : vector<8x1x1xf32> to vector<8x1x1xf32>
      %94 = vector.broadcast %93 : vector<8x1x1xf32> to vector<8x8x16xf32>
      %c4_i32 = arith.constant 4 : i32
      %95 = vector.broadcast %c4_i32 : i32 to vector<8x16xi32>
      %96 = arith.cmpi eq, %50, %95 : vector<8x16xi32>
      %97 = vector.shape_cast %96 : vector<8x16xi1> to vector<1x8x16xi1>
      %98 = vector.shape_cast %97 : vector<1x8x16xi1> to vector<1x8x16xi1>
      %99 = vector.broadcast %98 : vector<1x8x16xi1> to vector<8x8x16xi1>
      %100 = arith.select %99, %94, %89 : vector<8x8x16xi1>, vector<8x8x16xf32>
      %101 = vector.extract_strided_slice %51 {offsets = [0, 5], sizes = [8, 1], strides = [1, 1]} : vector<8x32xf32> to vector<8x1xf32>
      %102 = vector.shape_cast %101 : vector<8x1xf32> to vector<8xf32>
      %103 = vector.shape_cast %102 : vector<8xf32> to vector<8x1x1xf32>
      %104 = vector.shape_cast %103 : vector<8x1x1xf32> to vector<8x1x1xf32>
      %105 = vector.broadcast %104 : vector<8x1x1xf32> to vector<8x8x16xf32>
      %c5_i32 = arith.constant 5 : i32
      %106 = vector.broadcast %c5_i32 : i32 to vector<8x16xi32>
      %107 = arith.cmpi eq, %50, %106 : vector<8x16xi32>
      %108 = vector.shape_cast %107 : vector<8x16xi1> to vector<1x8x16xi1>
      %109 = vector.shape_cast %108 : vector<1x8x16xi1> to vector<1x8x16xi1>
      %110 = vector.broadcast %109 : vector<1x8x16xi1> to vector<8x8x16xi1>
      %111 = arith.select %110, %105, %100 : vector<8x8x16xi1>, vector<8x8x16xf32>
      %112 = vector.extract_strided_slice %51 {offsets = [0, 6], sizes = [8, 1], strides = [1, 1]} : vector<8x32xf32> to vector<8x1xf32>
      %113 = vector.shape_cast %112 : vector<8x1xf32> to vector<8xf32>
      %114 = vector.shape_cast %113 : vector<8xf32> to vector<8x1x1xf32>
      %115 = vector.shape_cast %114 : vector<8x1x1xf32> to vector<8x1x1xf32>
      %116 = vector.broadcast %115 : vector<8x1x1xf32> to vector<8x8x16xf32>
      %c6_i32 = arith.constant 6 : i32
      %117 = vector.broadcast %c6_i32 : i32 to vector<8x16xi32>
      %118 = arith.cmpi eq, %50, %117 : vector<8x16xi32>
      %119 = vector.shape_cast %118 : vector<8x16xi1> to vector<1x8x16xi1>
      %120 = vector.shape_cast %119 : vector<1x8x16xi1> to vector<1x8x16xi1>
      %121 = vector.broadcast %120 : vector<1x8x16xi1> to vector<8x8x16xi1>
      %122 = arith.select %121, %116, %111 : vector<8x8x16xi1>, vector<8x8x16xf32>
      %123 = vector.extract_strided_slice %51 {offsets = [0, 7], sizes = [8, 1], strides = [1, 1]} : vector<8x32xf32> to vector<8x1xf32>
      %124 = vector.shape_cast %123 : vector<8x1xf32> to vector<8xf32>
      %125 = vector.shape_cast %124 : vector<8xf32> to vector<8x1x1xf32>
      %126 = vector.shape_cast %125 : vector<8x1x1xf32> to vector<8x1x1xf32>
      %127 = vector.broadcast %126 : vector<8x1x1xf32> to vector<8x8x16xf32>
      %c7_i32 = arith.constant 7 : i32
      %128 = vector.broadcast %c7_i32 : i32 to vector<8x16xi32>
      %129 = arith.cmpi eq, %50, %128 : vector<8x16xi32>
      %130 = vector.shape_cast %129 : vector<8x16xi1> to vector<1x8x16xi1>
      %131 = vector.shape_cast %130 : vector<1x8x16xi1> to vector<1x8x16xi1>
      %132 = vector.broadcast %131 : vector<1x8x16xi1> to vector<8x8x16xi1>
      %133 = arith.select %132, %127, %122 : vector<8x8x16xi1>, vector<8x8x16xf32>
      %134 = vector.extract_strided_slice %51 {offsets = [0, 8], sizes = [8, 1], strides = [1, 1]} : vector<8x32xf32> to vector<8x1xf32>
      %135 = vector.shape_cast %134 : vector<8x1xf32> to vector<8xf32>
      %136 = vector.shape_cast %135 : vector<8xf32> to vector<8x1x1xf32>
      %137 = vector.shape_cast %136 : vector<8x1x1xf32> to vector<8x1x1xf32>
      %138 = vector.broadcast %137 : vector<8x1x1xf32> to vector<8x8x16xf32>
      %c8_i32_14 = arith.constant 8 : i32
      %139 = vector.broadcast %c8_i32_14 : i32 to vector<8x16xi32>
      %140 = arith.cmpi eq, %50, %139 : vector<8x16xi32>
      %141 = vector.shape_cast %140 : vector<8x16xi1> to vector<1x8x16xi1>
      %142 = vector.shape_cast %141 : vector<1x8x16xi1> to vector<1x8x16xi1>
      %143 = vector.broadcast %142 : vector<1x8x16xi1> to vector<8x8x16xi1>
      %144 = arith.select %143, %138, %133 : vector<8x8x16xi1>, vector<8x8x16xf32>
      %145 = vector.extract_strided_slice %51 {offsets = [0, 9], sizes = [8, 1], strides = [1, 1]} : vector<8x32xf32> to vector<8x1xf32>
      %146 = vector.shape_cast %145 : vector<8x1xf32> to vector<8xf32>
      %147 = vector.shape_cast %146 : vector<8xf32> to vector<8x1x1xf32>
      %148 = vector.shape_cast %147 : vector<8x1x1xf32> to vector<8x1x1xf32>
      %149 = vector.broadcast %148 : vector<8x1x1xf32> to vector<8x8x16xf32>
      %c9_i32 = arith.constant 9 : i32
      %150 = vector.broadcast %c9_i32 : i32 to vector<8x16xi32>
      %151 = arith.cmpi eq, %50, %150 : vector<8x16xi32>
      %152 = vector.shape_cast %151 : vector<8x16xi1> to vector<1x8x16xi1>
      %153 = vector.shape_cast %152 : vector<1x8x16xi1> to vector<1x8x16xi1>
      %154 = vector.broadcast %153 : vector<1x8x16xi1> to vector<8x8x16xi1>
      %155 = arith.select %154, %149, %144 : vector<8x8x16xi1>, vector<8x8x16xf32>
      %156 = vector.extract_strided_slice %51 {offsets = [0, 10], sizes = [8, 1], strides = [1, 1]} : vector<8x32xf32> to vector<8x1xf32>
      %157 = vector.shape_cast %156 : vector<8x1xf32> to vector<8xf32>
      %158 = vector.shape_cast %157 : vector<8xf32> to vector<8x1x1xf32>
      %159 = vector.shape_cast %158 : vector<8x1x1xf32> to vector<8x1x1xf32>
      %160 = vector.broadcast %159 : vector<8x1x1xf32> to vector<8x8x16xf32>
      %c10_i32 = arith.constant 10 : i32
      %161 = vector.broadcast %c10_i32 : i32 to vector<8x16xi32>
      %162 = arith.cmpi eq, %50, %161 : vector<8x16xi32>
      %163 = vector.shape_cast %162 : vector<8x16xi1> to vector<1x8x16xi1>
      %164 = vector.shape_cast %163 : vector<1x8x16xi1> to vector<1x8x16xi1>
      %165 = vector.broadcast %164 : vector<1x8x16xi1> to vector<8x8x16xi1>
      %166 = arith.select %165, %160, %155 : vector<8x8x16xi1>, vector<8x8x16xf32>
      %167 = vector.extract_strided_slice %51 {offsets = [0, 11], sizes = [8, 1], strides = [1, 1]} : vector<8x32xf32> to vector<8x1xf32>
      %168 = vector.shape_cast %167 : vector<8x1xf32> to vector<8xf32>
      %169 = vector.shape_cast %168 : vector<8xf32> to vector<8x1x1xf32>
      %170 = vector.shape_cast %169 : vector<8x1x1xf32> to vector<8x1x1xf32>
      %171 = vector.broadcast %170 : vector<8x1x1xf32> to vector<8x8x16xf32>
      %c11_i32 = arith.constant 11 : i32
      %172 = vector.broadcast %c11_i32 : i32 to vector<8x16xi32>
      %173 = arith.cmpi eq, %50, %172 : vector<8x16xi32>
      %174 = vector.shape_cast %173 : vector<8x16xi1> to vector<1x8x16xi1>
      %175 = vector.shape_cast %174 : vector<1x8x16xi1> to vector<1x8x16xi1>
      %176 = vector.broadcast %175 : vector<1x8x16xi1> to vector<8x8x16xi1>
      %177 = arith.select %176, %171, %166 : vector<8x8x16xi1>, vector<8x8x16xf32>
      %178 = vector.extract_strided_slice %51 {offsets = [0, 12], sizes = [8, 1], strides = [1, 1]} : vector<8x32xf32> to vector<8x1xf32>
      %179 = vector.shape_cast %178 : vector<8x1xf32> to vector<8xf32>
      %180 = vector.shape_cast %179 : vector<8xf32> to vector<8x1x1xf32>
      %181 = vector.shape_cast %180 : vector<8x1x1xf32> to vector<8x1x1xf32>
      %182 = vector.broadcast %181 : vector<8x1x1xf32> to vector<8x8x16xf32>
      %c12_i32 = arith.constant 12 : i32
      %183 = vector.broadcast %c12_i32 : i32 to vector<8x16xi32>
      %184 = arith.cmpi eq, %50, %183 : vector<8x16xi32>
      %185 = vector.shape_cast %184 : vector<8x16xi1> to vector<1x8x16xi1>
      %186 = vector.shape_cast %185 : vector<1x8x16xi1> to vector<1x8x16xi1>
      %187 = vector.broadcast %186 : vector<1x8x16xi1> to vector<8x8x16xi1>
      %188 = arith.select %187, %182, %177 : vector<8x8x16xi1>, vector<8x8x16xf32>
      %189 = vector.extract_strided_slice %51 {offsets = [0, 13], sizes = [8, 1], strides = [1, 1]} : vector<8x32xf32> to vector<8x1xf32>
      %190 = vector.shape_cast %189 : vector<8x1xf32> to vector<8xf32>
      %191 = vector.shape_cast %190 : vector<8xf32> to vector<8x1x1xf32>
      %192 = vector.shape_cast %191 : vector<8x1x1xf32> to vector<8x1x1xf32>
      %193 = vector.broadcast %192 : vector<8x1x1xf32> to vector<8x8x16xf32>
      %c13_i32 = arith.constant 13 : i32
      %194 = vector.broadcast %c13_i32 : i32 to vector<8x16xi32>
      %195 = arith.cmpi eq, %50, %194 : vector<8x16xi32>
      %196 = vector.shape_cast %195 : vector<8x16xi1> to vector<1x8x16xi1>
      %197 = vector.shape_cast %196 : vector<1x8x16xi1> to vector<1x8x16xi1>
      %198 = vector.broadcast %197 : vector<1x8x16xi1> to vector<8x8x16xi1>
      %199 = arith.select %198, %193, %188 : vector<8x8x16xi1>, vector<8x8x16xf32>
      %200 = vector.extract_strided_slice %51 {offsets = [0, 14], sizes = [8, 1], strides = [1, 1]} : vector<8x32xf32> to vector<8x1xf32>
      %201 = vector.shape_cast %200 : vector<8x1xf32> to vector<8xf32>
      %202 = vector.shape_cast %201 : vector<8xf32> to vector<8x1x1xf32>
      %203 = vector.shape_cast %202 : vector<8x1x1xf32> to vector<8x1x1xf32>
      %204 = vector.broadcast %203 : vector<8x1x1xf32> to vector<8x8x16xf32>
      %c14_i32 = arith.constant 14 : i32
      %205 = vector.broadcast %c14_i32 : i32 to vector<8x16xi32>
      %206 = arith.cmpi eq, %50, %205 : vector<8x16xi32>
      %207 = vector.shape_cast %206 : vector<8x16xi1> to vector<1x8x16xi1>
      %208 = vector.shape_cast %207 : vector<1x8x16xi1> to vector<1x8x16xi1>
      %209 = vector.broadcast %208 : vector<1x8x16xi1> to vector<8x8x16xi1>
      %210 = arith.select %209, %204, %199 : vector<8x8x16xi1>, vector<8x8x16xf32>
      %211 = vector.extract_strided_slice %51 {offsets = [0, 15], sizes = [8, 1], strides = [1, 1]} : vector<8x32xf32> to vector<8x1xf32>
      %212 = vector.shape_cast %211 : vector<8x1xf32> to vector<8xf32>
      %213 = vector.shape_cast %212 : vector<8xf32> to vector<8x1x1xf32>
      %214 = vector.shape_cast %213 : vector<8x1x1xf32> to vector<8x1x1xf32>
      %215 = vector.broadcast %214 : vector<8x1x1xf32> to vector<8x8x16xf32>
      %c15_i32_15 = arith.constant 15 : i32
      %216 = vector.broadcast %c15_i32_15 : i32 to vector<8x16xi32>
      %217 = arith.cmpi eq, %50, %216 : vector<8x16xi32>
      %218 = vector.shape_cast %217 : vector<8x16xi1> to vector<1x8x16xi1>
      %219 = vector.shape_cast %218 : vector<1x8x16xi1> to vector<1x8x16xi1>
      %220 = vector.broadcast %219 : vector<1x8x16xi1> to vector<8x8x16xi1>
      %221 = arith.select %220, %215, %210 : vector<8x8x16xi1>, vector<8x8x16xf32>
      %222 = vector.extract_strided_slice %51 {offsets = [0, 16], sizes = [8, 1], strides = [1, 1]} : vector<8x32xf32> to vector<8x1xf32>
      %223 = vector.shape_cast %222 : vector<8x1xf32> to vector<8xf32>
      %224 = vector.shape_cast %223 : vector<8xf32> to vector<8x1x1xf32>
      %225 = vector.shape_cast %224 : vector<8x1x1xf32> to vector<8x1x1xf32>
      %226 = vector.broadcast %225 : vector<8x1x1xf32> to vector<8x8x16xf32>
      %c16_i32_16 = arith.constant 16 : i32
      %227 = vector.broadcast %c16_i32_16 : i32 to vector<8x16xi32>
      %228 = arith.cmpi eq, %50, %227 : vector<8x16xi32>
      %229 = vector.shape_cast %228 : vector<8x16xi1> to vector<1x8x16xi1>
      %230 = vector.shape_cast %229 : vector<1x8x16xi1> to vector<1x8x16xi1>
      %231 = vector.broadcast %230 : vector<1x8x16xi1> to vector<8x8x16xi1>
      %232 = arith.select %231, %226, %221 : vector<8x8x16xi1>, vector<8x8x16xf32>
      %233 = vector.extract_strided_slice %51 {offsets = [0, 17], sizes = [8, 1], strides = [1, 1]} : vector<8x32xf32> to vector<8x1xf32>
      %234 = vector.shape_cast %233 : vector<8x1xf32> to vector<8xf32>
      %235 = vector.shape_cast %234 : vector<8xf32> to vector<8x1x1xf32>
      %236 = vector.shape_cast %235 : vector<8x1x1xf32> to vector<8x1x1xf32>
      %237 = vector.broadcast %236 : vector<8x1x1xf32> to vector<8x8x16xf32>
      %c17_i32 = arith.constant 17 : i32
      %238 = vector.broadcast %c17_i32 : i32 to vector<8x16xi32>
      %239 = arith.cmpi eq, %50, %238 : vector<8x16xi32>
      %240 = vector.shape_cast %239 : vector<8x16xi1> to vector<1x8x16xi1>
      %241 = vector.shape_cast %240 : vector<1x8x16xi1> to vector<1x8x16xi1>
      %242 = vector.broadcast %241 : vector<1x8x16xi1> to vector<8x8x16xi1>
      %243 = arith.select %242, %237, %232 : vector<8x8x16xi1>, vector<8x8x16xf32>
      %244 = vector.extract_strided_slice %51 {offsets = [0, 18], sizes = [8, 1], strides = [1, 1]} : vector<8x32xf32> to vector<8x1xf32>
      %245 = vector.shape_cast %244 : vector<8x1xf32> to vector<8xf32>
      %246 = vector.shape_cast %245 : vector<8xf32> to vector<8x1x1xf32>
      %247 = vector.shape_cast %246 : vector<8x1x1xf32> to vector<8x1x1xf32>
      %248 = vector.broadcast %247 : vector<8x1x1xf32> to vector<8x8x16xf32>
      %c18_i32 = arith.constant 18 : i32
      %249 = vector.broadcast %c18_i32 : i32 to vector<8x16xi32>
      %250 = arith.cmpi eq, %50, %249 : vector<8x16xi32>
      %251 = vector.shape_cast %250 : vector<8x16xi1> to vector<1x8x16xi1>
      %252 = vector.shape_cast %251 : vector<1x8x16xi1> to vector<1x8x16xi1>
      %253 = vector.broadcast %252 : vector<1x8x16xi1> to vector<8x8x16xi1>
      %254 = arith.select %253, %248, %243 : vector<8x8x16xi1>, vector<8x8x16xf32>
      %255 = vector.extract_strided_slice %51 {offsets = [0, 19], sizes = [8, 1], strides = [1, 1]} : vector<8x32xf32> to vector<8x1xf32>
      %256 = vector.shape_cast %255 : vector<8x1xf32> to vector<8xf32>
      %257 = vector.shape_cast %256 : vector<8xf32> to vector<8x1x1xf32>
      %258 = vector.shape_cast %257 : vector<8x1x1xf32> to vector<8x1x1xf32>
      %259 = vector.broadcast %258 : vector<8x1x1xf32> to vector<8x8x16xf32>
      %c19_i32 = arith.constant 19 : i32
      %260 = vector.broadcast %c19_i32 : i32 to vector<8x16xi32>
      %261 = arith.cmpi eq, %50, %260 : vector<8x16xi32>
      %262 = vector.shape_cast %261 : vector<8x16xi1> to vector<1x8x16xi1>
      %263 = vector.shape_cast %262 : vector<1x8x16xi1> to vector<1x8x16xi1>
      %264 = vector.broadcast %263 : vector<1x8x16xi1> to vector<8x8x16xi1>
      %265 = arith.select %264, %259, %254 : vector<8x8x16xi1>, vector<8x8x16xf32>
      %266 = vector.extract_strided_slice %51 {offsets = [0, 20], sizes = [8, 1], strides = [1, 1]} : vector<8x32xf32> to vector<8x1xf32>
      %267 = vector.shape_cast %266 : vector<8x1xf32> to vector<8xf32>
      %268 = vector.shape_cast %267 : vector<8xf32> to vector<8x1x1xf32>
      %269 = vector.shape_cast %268 : vector<8x1x1xf32> to vector<8x1x1xf32>
      %270 = vector.broadcast %269 : vector<8x1x1xf32> to vector<8x8x16xf32>
      %c20_i32 = arith.constant 20 : i32
      %271 = vector.broadcast %c20_i32 : i32 to vector<8x16xi32>
      %272 = arith.cmpi eq, %50, %271 : vector<8x16xi32>
      %273 = vector.shape_cast %272 : vector<8x16xi1> to vector<1x8x16xi1>
      %274 = vector.shape_cast %273 : vector<1x8x16xi1> to vector<1x8x16xi1>
      %275 = vector.broadcast %274 : vector<1x8x16xi1> to vector<8x8x16xi1>
      %276 = arith.select %275, %270, %265 : vector<8x8x16xi1>, vector<8x8x16xf32>
      %277 = vector.extract_strided_slice %51 {offsets = [0, 21], sizes = [8, 1], strides = [1, 1]} : vector<8x32xf32> to vector<8x1xf32>
      %278 = vector.shape_cast %277 : vector<8x1xf32> to vector<8xf32>
      %279 = vector.shape_cast %278 : vector<8xf32> to vector<8x1x1xf32>
      %280 = vector.shape_cast %279 : vector<8x1x1xf32> to vector<8x1x1xf32>
      %281 = vector.broadcast %280 : vector<8x1x1xf32> to vector<8x8x16xf32>
      %c21_i32 = arith.constant 21 : i32
      %282 = vector.broadcast %c21_i32 : i32 to vector<8x16xi32>
      %283 = arith.cmpi eq, %50, %282 : vector<8x16xi32>
      %284 = vector.shape_cast %283 : vector<8x16xi1> to vector<1x8x16xi1>
      %285 = vector.shape_cast %284 : vector<1x8x16xi1> to vector<1x8x16xi1>
      %286 = vector.broadcast %285 : vector<1x8x16xi1> to vector<8x8x16xi1>
      %287 = arith.select %286, %281, %276 : vector<8x8x16xi1>, vector<8x8x16xf32>
      %288 = vector.extract_strided_slice %51 {offsets = [0, 22], sizes = [8, 1], strides = [1, 1]} : vector<8x32xf32> to vector<8x1xf32>
      %289 = vector.shape_cast %288 : vector<8x1xf32> to vector<8xf32>
      %290 = vector.shape_cast %289 : vector<8xf32> to vector<8x1x1xf32>
      %291 = vector.shape_cast %290 : vector<8x1x1xf32> to vector<8x1x1xf32>
      %292 = vector.broadcast %291 : vector<8x1x1xf32> to vector<8x8x16xf32>
      %c22_i32 = arith.constant 22 : i32
      %293 = vector.broadcast %c22_i32 : i32 to vector<8x16xi32>
      %294 = arith.cmpi eq, %50, %293 : vector<8x16xi32>
      %295 = vector.shape_cast %294 : vector<8x16xi1> to vector<1x8x16xi1>
      %296 = vector.shape_cast %295 : vector<1x8x16xi1> to vector<1x8x16xi1>
      %297 = vector.broadcast %296 : vector<1x8x16xi1> to vector<8x8x16xi1>
      %298 = arith.select %297, %292, %287 : vector<8x8x16xi1>, vector<8x8x16xf32>
      %299 = vector.extract_strided_slice %51 {offsets = [0, 23], sizes = [8, 1], strides = [1, 1]} : vector<8x32xf32> to vector<8x1xf32>
      %300 = vector.shape_cast %299 : vector<8x1xf32> to vector<8xf32>
      %301 = vector.shape_cast %300 : vector<8xf32> to vector<8x1x1xf32>
      %302 = vector.shape_cast %301 : vector<8x1x1xf32> to vector<8x1x1xf32>
      %303 = vector.broadcast %302 : vector<8x1x1xf32> to vector<8x8x16xf32>
      %c23_i32_17 = arith.constant 23 : i32
      %304 = vector.broadcast %c23_i32_17 : i32 to vector<8x16xi32>
      %305 = arith.cmpi eq, %50, %304 : vector<8x16xi32>
      %306 = vector.shape_cast %305 : vector<8x16xi1> to vector<1x8x16xi1>
      %307 = vector.shape_cast %306 : vector<1x8x16xi1> to vector<1x8x16xi1>
      %308 = vector.broadcast %307 : vector<1x8x16xi1> to vector<8x8x16xi1>
      %309 = arith.select %308, %303, %298 : vector<8x8x16xi1>, vector<8x8x16xf32>
      %310 = vector.extract_strided_slice %51 {offsets = [0, 24], sizes = [8, 1], strides = [1, 1]} : vector<8x32xf32> to vector<8x1xf32>
      %311 = vector.shape_cast %310 : vector<8x1xf32> to vector<8xf32>
      %312 = vector.shape_cast %311 : vector<8xf32> to vector<8x1x1xf32>
      %313 = vector.shape_cast %312 : vector<8x1x1xf32> to vector<8x1x1xf32>
      %314 = vector.broadcast %313 : vector<8x1x1xf32> to vector<8x8x16xf32>
      %c24_i32 = arith.constant 24 : i32
      %315 = vector.broadcast %c24_i32 : i32 to vector<8x16xi32>
      %316 = arith.cmpi eq, %50, %315 : vector<8x16xi32>
      %317 = vector.shape_cast %316 : vector<8x16xi1> to vector<1x8x16xi1>
      %318 = vector.shape_cast %317 : vector<1x8x16xi1> to vector<1x8x16xi1>
      %319 = vector.broadcast %318 : vector<1x8x16xi1> to vector<8x8x16xi1>
      %320 = arith.select %319, %314, %309 : vector<8x8x16xi1>, vector<8x8x16xf32>
      %321 = vector.extract_strided_slice %51 {offsets = [0, 25], sizes = [8, 1], strides = [1, 1]} : vector<8x32xf32> to vector<8x1xf32>
      %322 = vector.shape_cast %321 : vector<8x1xf32> to vector<8xf32>
      %323 = vector.shape_cast %322 : vector<8xf32> to vector<8x1x1xf32>
      %324 = vector.shape_cast %323 : vector<8x1x1xf32> to vector<8x1x1xf32>
      %325 = vector.broadcast %324 : vector<8x1x1xf32> to vector<8x8x16xf32>
      %c25_i32 = arith.constant 25 : i32
      %326 = vector.broadcast %c25_i32 : i32 to vector<8x16xi32>
      %327 = arith.cmpi eq, %50, %326 : vector<8x16xi32>
      %328 = vector.shape_cast %327 : vector<8x16xi1> to vector<1x8x16xi1>
      %329 = vector.shape_cast %328 : vector<1x8x16xi1> to vector<1x8x16xi1>
      %330 = vector.broadcast %329 : vector<1x8x16xi1> to vector<8x8x16xi1>
      %331 = arith.select %330, %325, %320 : vector<8x8x16xi1>, vector<8x8x16xf32>
      %332 = vector.extract_strided_slice %51 {offsets = [0, 26], sizes = [8, 1], strides = [1, 1]} : vector<8x32xf32> to vector<8x1xf32>
      %333 = vector.shape_cast %332 : vector<8x1xf32> to vector<8xf32>
      %334 = vector.shape_cast %333 : vector<8xf32> to vector<8x1x1xf32>
      %335 = vector.shape_cast %334 : vector<8x1x1xf32> to vector<8x1x1xf32>
      %336 = vector.broadcast %335 : vector<8x1x1xf32> to vector<8x8x16xf32>
      %c26_i32 = arith.constant 26 : i32
      %337 = vector.broadcast %c26_i32 : i32 to vector<8x16xi32>
      %338 = arith.cmpi eq, %50, %337 : vector<8x16xi32>
      %339 = vector.shape_cast %338 : vector<8x16xi1> to vector<1x8x16xi1>
      %340 = vector.shape_cast %339 : vector<1x8x16xi1> to vector<1x8x16xi1>
      %341 = vector.broadcast %340 : vector<1x8x16xi1> to vector<8x8x16xi1>
      %342 = arith.select %341, %336, %331 : vector<8x8x16xi1>, vector<8x8x16xf32>
      %343 = vector.extract_strided_slice %51 {offsets = [0, 27], sizes = [8, 1], strides = [1, 1]} : vector<8x32xf32> to vector<8x1xf32>
      %344 = vector.shape_cast %343 : vector<8x1xf32> to vector<8xf32>
      %345 = vector.shape_cast %344 : vector<8xf32> to vector<8x1x1xf32>
      %346 = vector.shape_cast %345 : vector<8x1x1xf32> to vector<8x1x1xf32>
      %347 = vector.broadcast %346 : vector<8x1x1xf32> to vector<8x8x16xf32>
      %c27_i32 = arith.constant 27 : i32
      %348 = vector.broadcast %c27_i32 : i32 to vector<8x16xi32>
      %349 = arith.cmpi eq, %50, %348 : vector<8x16xi32>
      %350 = vector.shape_cast %349 : vector<8x16xi1> to vector<1x8x16xi1>
      %351 = vector.shape_cast %350 : vector<1x8x16xi1> to vector<1x8x16xi1>
      %352 = vector.broadcast %351 : vector<1x8x16xi1> to vector<8x8x16xi1>
      %353 = arith.select %352, %347, %342 : vector<8x8x16xi1>, vector<8x8x16xf32>
      %354 = vector.extract_strided_slice %51 {offsets = [0, 28], sizes = [8, 1], strides = [1, 1]} : vector<8x32xf32> to vector<8x1xf32>
      %355 = vector.shape_cast %354 : vector<8x1xf32> to vector<8xf32>
      %356 = vector.shape_cast %355 : vector<8xf32> to vector<8x1x1xf32>
      %357 = vector.shape_cast %356 : vector<8x1x1xf32> to vector<8x1x1xf32>
      %358 = vector.broadcast %357 : vector<8x1x1xf32> to vector<8x8x16xf32>
      %c28_i32 = arith.constant 28 : i32
      %359 = vector.broadcast %c28_i32 : i32 to vector<8x16xi32>
      %360 = arith.cmpi eq, %50, %359 : vector<8x16xi32>
      %361 = vector.shape_cast %360 : vector<8x16xi1> to vector<1x8x16xi1>
      %362 = vector.shape_cast %361 : vector<1x8x16xi1> to vector<1x8x16xi1>
      %363 = vector.broadcast %362 : vector<1x8x16xi1> to vector<8x8x16xi1>
      %364 = arith.select %363, %358, %353 : vector<8x8x16xi1>, vector<8x8x16xf32>
      %365 = vector.extract_strided_slice %51 {offsets = [0, 29], sizes = [8, 1], strides = [1, 1]} : vector<8x32xf32> to vector<8x1xf32>
      %366 = vector.shape_cast %365 : vector<8x1xf32> to vector<8xf32>
      %367 = vector.shape_cast %366 : vector<8xf32> to vector<8x1x1xf32>
      %368 = vector.shape_cast %367 : vector<8x1x1xf32> to vector<8x1x1xf32>
      %369 = vector.broadcast %368 : vector<8x1x1xf32> to vector<8x8x16xf32>
      %c29_i32 = arith.constant 29 : i32
      %370 = vector.broadcast %c29_i32 : i32 to vector<8x16xi32>
      %371 = arith.cmpi eq, %50, %370 : vector<8x16xi32>
      %372 = vector.shape_cast %371 : vector<8x16xi1> to vector<1x8x16xi1>
      %373 = vector.shape_cast %372 : vector<1x8x16xi1> to vector<1x8x16xi1>
      %374 = vector.broadcast %373 : vector<1x8x16xi1> to vector<8x8x16xi1>
      %375 = arith.select %374, %369, %364 : vector<8x8x16xi1>, vector<8x8x16xf32>
      %376 = vector.extract_strided_slice %51 {offsets = [0, 30], sizes = [8, 1], strides = [1, 1]} : vector<8x32xf32> to vector<8x1xf32>
      %377 = vector.shape_cast %376 : vector<8x1xf32> to vector<8xf32>
      %378 = vector.shape_cast %377 : vector<8xf32> to vector<8x1x1xf32>
      %379 = vector.shape_cast %378 : vector<8x1x1xf32> to vector<8x1x1xf32>
      %380 = vector.broadcast %379 : vector<8x1x1xf32> to vector<8x8x16xf32>
      %c30_i32 = arith.constant 30 : i32
      %381 = vector.broadcast %c30_i32 : i32 to vector<8x16xi32>
      %382 = arith.cmpi eq, %50, %381 : vector<8x16xi32>
      %383 = vector.shape_cast %382 : vector<8x16xi1> to vector<1x8x16xi1>
      %384 = vector.shape_cast %383 : vector<1x8x16xi1> to vector<1x8x16xi1>
      %385 = vector.broadcast %384 : vector<1x8x16xi1> to vector<8x8x16xi1>
      %386 = arith.select %385, %380, %375 : vector<8x8x16xi1>, vector<8x8x16xf32>
      %387 = vector.extract_strided_slice %51 {offsets = [0, 31], sizes = [8, 1], strides = [1, 1]} : vector<8x32xf32> to vector<8x1xf32>
      %388 = vector.shape_cast %387 : vector<8x1xf32> to vector<8xf32>
      %389 = vector.shape_cast %388 : vector<8xf32> to vector<8x1x1xf32>
      %390 = vector.shape_cast %389 : vector<8x1x1xf32> to vector<8x1x1xf32>
      %391 = vector.broadcast %390 : vector<8x1x1xf32> to vector<8x8x16xf32>
      %c31_i32 = arith.constant 31 : i32
      %392 = vector.broadcast %c31_i32 : i32 to vector<8x16xi32>
      %393 = arith.cmpi eq, %50, %392 : vector<8x16xi32>
      %394 = vector.shape_cast %393 : vector<8x16xi1> to vector<1x8x16xi1>
      %395 = vector.shape_cast %394 : vector<1x8x16xi1> to vector<1x8x16xi1>
      %396 = vector.broadcast %395 : vector<1x8x16xi1> to vector<8x8x16xi1>
      %397 = arith.select %396, %391, %386 : vector<8x8x16xi1>, vector<8x8x16xf32>
      %c0_18 = arith.constant 0 : index
      %c0_19 = arith.constant 0 : index
      %c0_20 = arith.constant 0 : index
      %398 = vector.load %arg3[%c0_18, %c0_19, %c0_20] : memref<8x8x16xf32, #tpu.memory_space<vmem>>, vector<8x8x16xf32>
      tpu.vector_store %arg3[%c0_18, %c0_19, %c0_20], %397 {strides = array<i32>} : memref<8x8x16xf32, #tpu.memory_space<vmem>>, vector<8x8x16xf32>,
    } else {
    }
    return
  }
  func.func @transform_0(%arg0: i32, %arg1: i32) -> (i32, i32) {
    %c0_i32 = arith.constant 0 : i32
    %c0_i32_0 = arith.constant 0 : i32
    %c0_i32_1 = arith.constant 0 : i32
    return %c0_i32, %c0_i32_0 : i32, i32
  }
  func.func @transform_1(%arg0: i32, %arg1: i32) -> (i32, i32, i32) {
    %c0_i32 = arith.constant 0 : i32
    %c0_i32_0 = arith.constant 0 : i32
    return %c0_i32, %arg0, %arg1 : i32, i32, i32
  }
}

</mosaic_0001>

<llo_original>
// kernel: tpu_custom_call.1
$region0: #{tpu_custom_call.1}
  #allocation0 [shape = 'u32[]', space=smem, size = 0x4, offset = 0x4, fixed_abs, tag = 'smem constant byte address 0x4 - core index']
  #allocation1 [shape = 'u32[144,128]{1,0:T(1,128)}', space=vmem, size = 0x12000, scoped, tag = 'internal scratch']
  %s0 = inlined_call_operand.hbm [shape: f32[8,32], index: 0, kind: input, shape index: {}]
  %s1 = inlined_call_operand.hbm [shape: f32[8,8,16], index: 1, kind: output, shape index: {}]
  %s2 = sld [smem:[#allocation0]]
  $region30: #{tpu_custom_call.1} parent=0
    _
  %s4 = ssub.s32 1, %s2
  %s5 = scalar_select 0, %s4, %s2
  $region1: #{tpu_custom_call.1} parent=0
    #allocation2 [shape = 'u8[4096]{0}', space=vmem, size = 0x1000, scoped, tag = 'input window, operand 0, single buffered']
    #allocation3 [shape = 's32[1]{0}', space=sflag, size = 0x4, scoped, tag = 'scoped memory for tpu_custom_call.1']
    #allocation4 [shape = 's32[1]{0}', space=sflag, size = 0x4, scoped, tag = 'scoped memory for tpu_custom_call.1']
    #allocation5 [shape = 'u8[32768]{0}', space=vmem, size = 0x8000, scoped, tag = 'output window, operand 0, single buffered']
    %6 = vsyncpa [#allocation3], 0
    %7 = vsyncpa [#allocation4], 0
    // Predicated region
    $region2: #{tpu_custom_call.1} parent=1 // pred_check
      _
    $region3: #{tpu_custom_call.1} parent=1 // pred_check_branch
      %9 = sbr.rel (0) target = $region5
    $region4: #{tpu_custom_call.1} parent=1 // pred_region
      %s11 = ssub.s32 128, 128
      %12 = vsyncadd [#allocation3], %s11
      %s14 = sshll.u32 [#allocation2], 4
      %s15 = int_to_ptr.vmem [resolvable:$true] %s14
      %17 = dma.hbm_to_vmem [thread:$0]  %s0, 128, %s15, [#allocation3]
    $region5: #{tpu_custom_call.1} parent=1 // pred_fallthru
      _
    // Predicated region
    $region6: #{tpu_custom_call.1} parent=1 // pred_check
      _
    $region7: #{tpu_custom_call.1} parent=1 // pred_check_branch
      %19 = sbr.rel (0) target = $region9
    $region8: #{tpu_custom_call.1} parent=1 // pred_region
      %20 = dma.done [#allocation3], 128
    $region9: #{tpu_custom_call.1} parent=1 // pred_fallthru
      _
    %s21 = smul.u32 0, 8
    %s22 = smul.u32 0, 16
    %s23 = sadd.s32 %s21, 7
    %s24 = ssub.s32 %s22, %s23
    %s25 = sadd.s32 %s22, 15
    %s26 = ssub.s32 %s25, %s21
    %p27 = scmp.ge.s32.totalorder %s24, 128
    %p28 = scmp.le.s32.totalorder %s26, 4294967168
    %p29 = scmp.lt.s32.totalorder %s24, 128
    %p30 = scmp.gt.s32.totalorder %s26, 4294967168
    %p31 = pnand %p29, %p30
    %p32 = pneg %p31
    // Predicated region
    $region10: #{tpu_custom_call.1} parent=1 // pred_check
      %p33 = pneg %p27
    $region11: #{tpu_custom_call.1} parent=1 // pred_check_branch
      %35 = sbr.rel (%p33) target = $region13
    $region12: #{tpu_custom_call.1} parent=1 // pred_region
      %v36 = vld [vmem:[#allocation2] sm:$0xff]
      %v38 = vcombine.high %v36, %v36
      %v40 = vunpack.c.l.s4 1966171168
      %v41 = vunpack.c.0.s8 %v40
      %v42 = vlaneseq
      %v43 = vshrl.u32 %v42, 7
      %v44 = vsub.s32 %v41, %v43
      %v45 = vrot.slane %v36, %v44
      %v47 = vunpack.c.l.s4 1966171168
      %v48 = vunpack.c.0.s8 %v47
      %v49 = vlaneseq
      %v50 = vshrl.u32 %v49, 7
      %v51 = vsub.s32 %v48, %v50
      %v52 = vrot.slane %v38, %v51
      %v53 = vcombine.high %v45, %v45
      %v54 = vcombine.high %v52, %v52
      %v56 = vunpack.c.l.s4 1966171168
      %v57 = vunpack.c.0.s8 %v56
      %v58 = vlaneseq
      %v59 = vshrl.u32 %v58, 7
      %v60 = vsub.s32 %v57, %v59
      %v61 = vrot.slane %v45, %v60
      %v63 = vunpack.c.l.s4 1966171168
      %v64 = vunpack.c.0.s8 %v63
      %v65 = vlaneseq
      %v66 = vshrl.u32 %v65, 7
      %v67 = vsub.s32 %v64, %v66
      %v68 = vrot.slane %v52, %v67
      %v70 = vunpack.c.l.s4 1966171168
      %v71 = vunpack.c.0.s8 %v70
      %v72 = vlaneseq
      %v73 = vshrl.u32 %v72, 7
      %v74 = vsub.s32 %v71, %v73
      %v75 = vrot.slane %v53, %v74
      %v77 = vunpack.c.l.s4 1966171168
      %v78 = vunpack.c.0.s8 %v77
      %v79 = vlaneseq
      %v80 = vshrl.u32 %v79, 7
      %v81 = vsub.s32 %v78, %v80
      %v82 = vrot.slane %v54, %v81
      %v83 = vcombine.high %v61, %v61
      %v84 = vcombine.high %v68, %v68
      %v85 = vcombine.high %v75, %v75
      %v86 = vcombine.high %v82, %v82
      %v87 = vlaneseq
      %v88 = vshrl.u32 %v87, 7
      %v89 = vsub.s32 0, %v88
      %v90 = vrot.slane %v61, %v89
      %v91 = vlaneseq
      %v92 = vshrl.u32 %v91, 7
      %v93 = vsub.s32 0, %v92
      %v94 = vrot.slane %v75, %v93
      %v95 = vlaneseq
      %v96 = vshrl.u32 %v95, 7
      %v97 = vsub.s32 0, %v96
      %v98 = vrot.slane %v83, %v97
      %v99 = vlaneseq
      %v100 = vshrl.u32 %v99, 7
      %v101 = vsub.s32 0, %v100
      %v102 = vrot.slane %v85, %v101
      %v103 = vlaneseq
      %v104 = vshrl.u32 %v103, 7
      %v105 = vsub.s32 0, %v104
      %v106 = vrot.slane %v68, %v105
      %v107 = vlaneseq
      %v108 = vshrl.u32 %v107, 7
      %v109 = vsub.s32 0, %v108
      %v110 = vrot.slane %v82, %v109
      %v111 = vlaneseq
      %v112 = vshrl.u32 %v111, 7
      %v113 = vsub.s32 0, %v112
      %v114 = vrot.slane %v84, %v113
      %v115 = vlaneseq
      %v116 = vshrl.u32 %v115, 7
      %v117 = vsub.s32 0, %v116
      %v118 = vrot.slane %v86, %v117
      %119 = vset.pattern.permute.xlu0 31
      %120 = vperm.xlu0 %119, %v90
      %v121 = vpop.permute.xlu0 %120
      %123 = vset.pattern.permute.xlu0 31
      %124 = vperm.xlu0 %123, %v94
      %v125 = vpop.permute.xlu0 %124
      %127 = vset.pattern.permute.xlu0 31
      %128 = vperm.xlu0 %127, %v98
      %v129 = vpop.permute.xlu0 %128
      %131 = vset.pattern.permute.xlu0 31
      %132 = vperm.xlu0 %131, %v102
      %v133 = vpop.permute.xlu0 %132
      %135 = vset.pattern.permute.xlu0 31
      %136 = vperm.xlu0 %135, %v106
      %v137 = vpop.permute.xlu0 %136
      %139 = vset.pattern.permute.xlu0 31
      %140 = vperm.xlu0 %139, %v110
      %v141 = vpop.permute.xlu0 %140
      %143 = vset.pattern.permute.xlu0 31
      %144 = vperm.xlu0 %143, %v114
      %v145 = vpop.permute.xlu0 %144
      %147 = vset.pattern.permute.xlu0 31
      %148 = vperm.xlu0 %147, %v118
      %v149 = vpop.permute.xlu0 %148
      %vm151 = vcmask 130048
      %152 = vst.msk [vmem:[#allocation5] sm:$0xff] %vm151, %v121
      %153 = vst.msk [vmem:[#allocation5 + $0x8] sm:$0xff] %vm151, %v125
      %154 = vst.msk [vmem:[#allocation5 + $0x10] sm:$0xff] %vm151, %v129
      %155 = vst.msk [vmem:[#allocation5 + $0x18] sm:$0xff] %vm151, %v133
      %156 = vst.msk [vmem:[#allocation5 + $0x20] sm:$0xff] %vm151, %v137
      %157 = vst.msk [vmem:[#allocation5 + $0x28] sm:$0xff] %vm151, %v141
      %158 = vst.msk [vmem:[#allocation5 + $0x30] sm:$0xff] %vm151, %v145
      %159 = vst.msk [vmem:[#allocation5 + $0x38] sm:$0xff] %vm151, %v149
    $region13: #{tpu_custom_call.1} parent=1 // pred_fallthru
      _
    // Predicated region
    $region14: #{tpu_custom_call.1} parent=1 // pred_check
      %p160 = pneg %p28
    $region15: #{tpu_custom_call.1} parent=1 // pred_check_branch
      %162 = sbr.rel (%p160) target = $region17
    $region16: #{tpu_custom_call.1} parent=1 // pred_region
      %v163 = vld [vmem:[#allocation2] sm:$0xff]
      %v165 = vcombine.high %v163, %v163
      %v167 = vunpack.c.l.s4 1966171168
      %v168 = vunpack.c.0.s8 %v167
      %v169 = vlaneseq
      %v170 = vshrl.u32 %v169, 7
      %v171 = vsub.s32 %v168, %v170
      %v172 = vrot.slane %v163, %v171
      %v174 = vunpack.c.l.s4 1966171168
      %v175 = vunpack.c.0.s8 %v174
      %v176 = vlaneseq
      %v177 = vshrl.u32 %v176, 7
      %v178 = vsub.s32 %v175, %v177
      %v179 = vrot.slane %v165, %v178
      %v180 = vcombine.high %v172, %v172
      %v181 = vcombine.high %v179, %v179
      %v183 = vunpack.c.l.s4 1966171168
      %v184 = vunpack.c.0.s8 %v183
      %v185 = vlaneseq
      %v186 = vshrl.u32 %v185, 7
      %v187 = vsub.s32 %v184, %v186
      %v188 = vrot.slane %v172, %v187
      %v190 = vunpack.c.l.s4 1966171168
      %v191 = vunpack.c.0.s8 %v190
      %v192 = vlaneseq
      %v193 = vshrl.u32 %v192, 7
      %v194 = vsub.s32 %v191, %v193
      %v195 = vrot.slane %v179, %v194
      %v197 = vunpack.c.l.s4 1966171168
      %v198 = vunpack.c.0.s8 %v197
      %v199 = vlaneseq
      %v200 = vshrl.u32 %v199, 7
      %v201 = vsub.s32 %v198, %v200
      %v202 = vrot.slane %v180, %v201
      %v204 = vunpack.c.l.s4 1966171168
      %v205 = vunpack.c.0.s8 %v204
      %v206 = vlaneseq
      %v207 = vshrl.u32 %v206, 7
      %v208 = vsub.s32 %v205, %v207
      %v209 = vrot.slane %v181, %v208
      %v210 = vcombine.high %v188, %v188
      %v211 = vcombine.high %v195, %v195
      %v212 = vcombine.high %v202, %v202
      %v213 = vcombine.high %v209, %v209
      %v214 = vlaneseq
      %v215 = vshrl.u32 %v214, 7
      %v216 = vsub.s32 0, %v215
      %v217 = vrot.slane %v188, %v216
      %v218 = vlaneseq
      %v219 = vshrl.u32 %v218, 7
      %v220 = vsub.s32 0, %v219
      %v221 = vrot.slane %v202, %v220
      %v222 = vlaneseq
      %v223 = vshrl.u32 %v222, 7
      %v224 = vsub.s32 0, %v223
      %v225 = vrot.slane %v210, %v224
      %v226 = vlaneseq
      %v227 = vshrl.u32 %v226, 7
      %v228 = vsub.s32 0, %v227
      %v229 = vrot.slane %v212, %v228
      %v230 = vlaneseq
      %v231 = vshrl.u32 %v230, 7
      %v232 = vsub.s32 0, %v231
      %v233 = vrot.slane %v195, %v232
      %v234 = vlaneseq
      %v235 = vshrl.u32 %v234, 7
      %v236 = vsub.s32 0, %v235
      %v237 = vrot.slane %v209, %v236
      %v238 = vlaneseq
      %v239 = vshrl.u32 %v238, 7
      %v240 = vsub.s32 0, %v239
      %v241 = vrot.slane %v211, %v240
      %v242 = vlaneseq
      %v243 = vshrl.u32 %v242, 7
      %v244 = vsub.s32 0, %v243
      %v245 = vrot.slane %v213, %v244
      %246 = vset.pattern.permute.xlu0 15
      %247 = vperm.xlu0 %246, %v217
      %v248 = vpop.permute.xlu0 %247
      %250 = vset.pattern.permute.xlu0 15
      %251 = vperm.xlu0 %250, %v221
      %v252 = vpop.permute.xlu0 %251
      %254 = vset.pattern.permute.xlu0 15
      %255 = vperm.xlu0 %254, %v225
      %v256 = vpop.permute.xlu0 %255
      %258 = vset.pattern.permute.xlu0 15
      %259 = vperm.xlu0 %258, %v229
      %v260 = vpop.permute.xlu0 %259
      %262 = vset.pattern.permute.xlu0 15
      %263 = vperm.xlu0 %262, %v233
      %v264 = vpop.permute.xlu0 %263
      %266 = vset.pattern.permute.xlu0 15
      %267 = vperm.xlu0 %266, %v237
      %v268 = vpop.permute.xlu0 %267
      %270 = vset.pattern.permute.xlu0 15
      %271 = vperm.xlu0 %270, %v241
      %v272 = vpop.permute.xlu0 %271
      %274 = vset.pattern.permute.xlu0 15
      %275 = vperm.xlu0 %274, %v245
      %v276 = vpop.permute.xlu0 %275
      %vm278 = vcmask 130048
      %279 = vst.msk [vmem:[#allocation5] sm:$0xff] %vm278, %v248
      %280 = vst.msk [vmem:[#allocation5 + $0x8] sm:$0xff] %vm278, %v252
      %281 = vst.msk [vmem:[#allocation5 + $0x10] sm:$0xff] %vm278, %v256
      %282 = vst.msk [vmem:[#allocation5 + $0x18] sm:$0xff] %vm278, %v260
      %283 = vst.msk [vmem:[#allocation5 + $0x20] sm:$0xff] %vm278, %v264
      %284 = vst.msk [vmem:[#allocation5 + $0x28] sm:$0xff] %vm278, %v268
      %285 = vst.msk [vmem:[#allocation5 + $0x30] sm:$0xff] %vm278, %v272
      %286 = vst.msk [vmem:[#allocation5 + $0x38] sm:$0xff] %vm278, %v276
    $region17: #{tpu_custom_call.1} parent=1 // pred_fallthru
      _
    // Predicated region
    $region18: #{tpu_custom_call.1} parent=1 // pred_check
      _
    $region19: #{tpu_custom_call.1} parent=1 // pred_check_branch
      %288 = sbr.rel (%p31) target = $region21
    $region20: #{tpu_custom_call.1} parent=1 // pred_region
      %v289 = vlaneseq
      %v290 = vshrl.u32 %v289, 7
      %v291 = vlaneseq
      %v292 = vand.u32 %v291, 127
      %v293 = vstv %s22
      %v294 = vadd.s32 %v293, %v292
      %v295 = vstv %s21
      %v296 = vadd.s32 %v295, %v290
      %v297 = vsub.s32 %v294, %v296
      %vm298 = vcmp.gt.s32.totalorder %v297, 0
      %v299 = vsel %vm298, 1, 0
      %v300 = vmul.u32 %v299, 16
      %vm301 = vcmp.lt.s32.totalorder %v297, 0
      %v302 = vsub.s32 0, %v297
      %v303 = vsel %vm301, %v302, %v297
      %vm304 = vcmp.lt.s32.totalorder %v303, 8
      %v305 = vcvt.s32.f32 %v303
      %v306 = vmul.f32 %v305, %v305
      %v307 = vmax.f32 %v306, 1.0
      %v309 = vshra.s32 %v307, 23
      %v310 = vsub.s32 %v309, 127
      %v311 = vadd.s32 %v310, 2
      %vm312 = vcmp.lt.s32.totalorder %v311, 15
      %v313 = vsel %vm312, %v311, 15
      %v314 = vsel %vm304, %v303, %v313
      %v315 = vadd.s32 %v300, %v314
      %v316 = vld [vmem:[#allocation2] sm:$0xff]
      %v318 = vcombine.high %v316, %v316
      %v320 = vunpack.c.l.s4 1966171168
      %v321 = vunpack.c.0.s8 %v320
      %v322 = vlaneseq
      %v323 = vshrl.u32 %v322, 7
      %v324 = vsub.s32 %v321, %v323
      %v325 = vrot.slane %v316, %v324
      %v327 = vunpack.c.l.s4 1966171168
      %v328 = vunpack.c.0.s8 %v327
      %v329 = vlaneseq
      %v330 = vshrl.u32 %v329, 7
      %v331 = vsub.s32 %v328, %v330
      %v332 = vrot.slane %v318, %v331
      %v333 = vcombine.high %v325, %v325
      %v334 = vcombine.high %v332, %v332
      %v336 = vunpack.c.l.s4 1966171168
      %v337 = vunpack.c.0.s8 %v336
      %v338 = vlaneseq
      %v339 = vshrl.u32 %v338, 7
      %v340 = vsub.s32 %v337, %v339
      %v341 = vrot.slane %v325, %v340
      %v343 = vunpack.c.l.s4 1966171168
      %v344 = vunpack.c.0.s8 %v343
      %v345 = vlaneseq
      %v346 = vshrl.u32 %v345, 7
      %v347 = vsub.s32 %v344, %v346
      %v348 = vrot.slane %v332, %v347
      %v350 = vunpack.c.l.s4 1966171168
      %v351 = vunpack.c.0.s8 %v350
      %v352 = vlaneseq
      %v353 = vshrl.u32 %v352, 7
      %v354 = vsub.s32 %v351, %v353
      %v355 = vrot.slane %v333, %v354
      %v357 = vunpack.c.l.s4 1966171168
      %v358 = vunpack.c.0.s8 %v357
      %v359 = vlaneseq
      %v360 = vshrl.u32 %v359, 7
      %v361 = vsub.s32 %v358, %v360
      %v362 = vrot.slane %v334, %v361
      %v363 = vcombine.high %v341, %v341
      %v364 = vcombine.high %v348, %v348
      %v365 = vcombine.high %v355, %v355
      %v366 = vcombine.high %v362, %v362
      %v367 = vlaneseq
      %v368 = vshrl.u32 %v367, 7
      %v369 = vsub.s32 0, %v368
      %v370 = vrot.slane %v341, %v369
      %v371 = vlaneseq
      %v372 = vshrl.u32 %v371, 7
      %v373 = vsub.s32 0, %v372
      %v374 = vrot.slane %v355, %v373
      %v375 = vlaneseq
      %v376 = vshrl.u32 %v375, 7
      %v377 = vsub.s32 0, %v376
      %v378 = vrot.slane %v363, %v377
      %v379 = vlaneseq
      %v380 = vshrl.u32 %v379, 7
      %v381 = vsub.s32 0, %v380
      %v382 = vrot.slane %v365, %v381
      %v383 = vlaneseq
      %v384 = vshrl.u32 %v383, 7
      %v385 = vsub.s32 0, %v384
      %v386 = vrot.slane %v348, %v385
      %v387 = vlaneseq
      %v388 = vshrl.u32 %v387, 7
      %v389 = vsub.s32 0, %v388
      %v390 = vrot.slane %v362, %v389
      %v391 = vlaneseq
      %v392 = vshrl.u32 %v391, 7
      %v393 = vsub.s32 0, %v392
      %v394 = vrot.slane %v364, %v393
      %v395 = vlaneseq
      %v396 = vshrl.u32 %v395, 7
      %v397 = vsub.s32 0, %v396
      %v398 = vrot.slane %v366, %v397
      %399 = vset.pattern.permute.xlu0 0
      %400 = vperm.xlu0 %399, %v370
      %v401 = vpop.permute.xlu0 %400
      %403 = vset.pattern.permute.xlu0 0
      %404 = vperm.xlu0 %403, %v374
      %v405 = vpop.permute.xlu0 %404
      %407 = vset.pattern.permute.xlu0 0
      %408 = vperm.xlu0 %407, %v378
      %v409 = vpop.permute.xlu0 %408
      %411 = vset.pattern.permute.xlu0 0
      %412 = vperm.xlu0 %411, %v382
      %v413 = vpop.permute.xlu0 %412
      %415 = vset.pattern.permute.xlu0 0
      %416 = vperm.xlu0 %415, %v386
      %v417 = vpop.permute.xlu0 %416
      %419 = vset.pattern.permute.xlu0 0
      %420 = vperm.xlu0 %419, %v390
      %v421 = vpop.permute.xlu0 %420
      %423 = vset.pattern.permute.xlu0 0
      %424 = vperm.xlu0 %423, %v394
      %v425 = vpop.permute.xlu0 %424
      %427 = vset.pattern.permute.xlu0 0
      %428 = vperm.xlu0 %427, %v398
      %v429 = vpop.permute.xlu0 %428
      %431 = vset.pattern.permute.xlu0 1
      %432 = vperm.xlu0 %431, %v370
      %v433 = vpop.permute.xlu0 %432
      %435 = vset.pattern.permute.xlu0 1
      %436 = vperm.xlu0 %435, %v374
      %v437 = vpop.permute.xlu0 %436
      %439 = vset.pattern.permute.xlu0 1
      %440 = vperm.xlu0 %439, %v378
      %v441 = vpop.permute.xlu0 %440
      %443 = vset.pattern.permute.xlu0 1
      %444 = vperm.xlu0 %443, %v382
      %v445 = vpop.permute.xlu0 %444
      %447 = vset.pattern.permute.xlu0 1
      %448 = vperm.xlu0 %447, %v386
      %v449 = vpop.permute.xlu0 %448
      %451 = vset.pattern.permute.xlu0 1
      %452 = vperm.xlu0 %451, %v390
      %v453 = vpop.permute.xlu0 %452
      %455 = vset.pattern.permute.xlu0 1
      %456 = vperm.xlu0 %455, %v394
      %v457 = vpop.permute.xlu0 %456
      %459 = vset.pattern.permute.xlu0 1
      %460 = vperm.xlu0 %459, %v398
      %v461 = vpop.permute.xlu0 %460
      %vm463 = vcmp.eq.s32.totalorder %v315, 1
      %v464 = vsel %vm463, 1, 0
      %vm465 = vcmp.eq.s32.totalorder %v464, 1
      %v466 = vsel %vm465, %v433, %v401
      %v467 = vsel %vm465, %v437, %v405
      %v468 = vsel %vm465, %v441, %v409
      %v469 = vsel %vm465, %v445, %v413
      %v470 = vsel %vm465, %v449, %v417
      %v471 = vsel %vm465, %v453, %v421
      %v472 = vsel %vm465, %v457, %v425
      %v473 = vsel %vm465, %v461, %v429
      %474 = vset.pattern.permute.xlu0 2
      %475 = vperm.xlu0 %474, %v370
      %v476 = vpop.permute.xlu0 %475
      %478 = vset.pattern.permute.xlu0 2
      %479 = vperm.xlu0 %478, %v374
      %v480 = vpop.permute.xlu0 %479
      %482 = vset.pattern.permute.xlu0 2
      %483 = vperm.xlu0 %482, %v378
      %v484 = vpop.permute.xlu0 %483
      %486 = vset.pattern.permute.xlu0 2
      %487 = vperm.xlu0 %486, %v382
      %v488 = vpop.permute.xlu0 %487
      %490 = vset.pattern.permute.xlu0 2
      %491 = vperm.xlu0 %490, %v386
      %v492 = vpop.permute.xlu0 %491
      %494 = vset.pattern.permute.xlu0 2
      %495 = vperm.xlu0 %494, %v390
      %v496 = vpop.permute.xlu0 %495
      %498 = vset.pattern.permute.xlu0 2
      %499 = vperm.xlu0 %498, %v394
      %v500 = vpop.permute.xlu0 %499
      %502 = vset.pattern.permute.xlu0 2
      %503 = vperm.xlu0 %502, %v398
      %v504 = vpop.permute.xlu0 %503
      %vm506 = vcmp.eq.s32.totalorder %v315, 2
      %v507 = vsel %vm506, 1, 0
      %vm508 = vcmp.eq.s32.totalorder %v507, 1
      %v509 = vsel %vm508, %v476, %v466
      %v510 = vsel %vm508, %v480, %v467
      %v511 = vsel %vm508, %v484, %v468
      %v512 = vsel %vm508, %v488, %v469
      %v513 = vsel %vm508, %v492, %v470
      %v514 = vsel %vm508, %v496, %v471
      %v515 = vsel %vm508, %v500, %v472
      %v516 = vsel %vm508, %v504, %v473
      %517 = vset.pattern.permute.xlu0 3
      %518 = vperm.xlu0 %517, %v370
      %v519 = vpop.permute.xlu0 %518
      %521 = vset.pattern.permute.xlu0 3
      %522 = vperm.xlu0 %521, %v374
      %v523 = vpop.permute.xlu0 %522
      %525 = vset.pattern.permute.xlu0 3
      %526 = vperm.xlu0 %525, %v378
      %v527 = vpop.permute.xlu0 %526
      %529 = vset.pattern.permute.xlu0 3
      %530 = vperm.xlu0 %529, %v382
      %v531 = vpop.permute.xlu0 %530
      %533 = vset.pattern.permute.xlu0 3
      %534 = vperm.xlu0 %533, %v386
      %v535 = vpop.permute.xlu0 %534
      %537 = vset.pattern.permute.xlu0 3
      %538 = vperm.xlu0 %537, %v390
      %v539 = vpop.permute.xlu0 %538
      %541 = vset.pattern.permute.xlu0 3
      %542 = vperm.xlu0 %541, %v394
      %v543 = vpop.permute.xlu0 %542
      %545 = vset.pattern.permute.xlu0 3
      %546 = vperm.xlu0 %545, %v398
      %v547 = vpop.permute.xlu0 %546
      %vm549 = vcmp.eq.s32.totalorder %v315, 3
      %v550 = vsel %vm549, 1, 0
      %vm551 = vcmp.eq.s32.totalorder %v550, 1
      %v552 = vsel %vm551, %v519, %v509
      %v553 = vsel %vm551, %v523, %v510
      %v554 = vsel %vm551, %v527, %v511
      %v555 = vsel %vm551, %v531, %v512
      %v556 = vsel %vm551, %v535, %v513
      %v557 = vsel %vm551, %v539, %v514
      %v558 = vsel %vm551, %v543, %v515
      %v559 = vsel %vm551, %v547, %v516
      %560 = vset.pattern.permute.xlu0 4
      %561 = vperm.xlu0 %560, %v370
      %v562 = vpop.permute.xlu0 %561
      %564 = vset.pattern.permute.xlu0 4
      %565 = vperm.xlu0 %564, %v374
      %v566 = vpop.permute.xlu0 %565
      %568 = vset.pattern.permute.xlu0 4
      %569 = vperm.xlu0 %568, %v378
      %v570 = vpop.permute.xlu0 %569
      %572 = vset.pattern.permute.xlu0 4
      %573 = vperm.xlu0 %572, %v382
      %v574 = vpop.permute.xlu0 %573
      %576 = vset.pattern.permute.xlu0 4
      %577 = vperm.xlu0 %576, %v386
      %v578 = vpop.permute.xlu0 %577
      %580 = vset.pattern.permute.xlu0 4
      %581 = vperm.xlu0 %580, %v390
      %v582 = vpop.permute.xlu0 %581
      %584 = vset.pattern.permute.xlu0 4
      %585 = vperm.xlu0 %584, %v394
      %v586 = vpop.permute.xlu0 %585
      %588 = vset.pattern.permute.xlu0 4
      %589 = vperm.xlu0 %588, %v398
      %v590 = vpop.permute.xlu0 %589
      %vm592 = vcmp.eq.s32.totalorder %v315, 4
      %v593 = vsel %vm592, 1, 0
      %vm594 = vcmp.eq.s32.totalorder %v593, 1
      %v595 = vsel %vm594, %v562, %v552
      %v596 = vsel %vm594, %v566, %v553
      %v597 = vsel %vm594, %v570, %v554
      %v598 = vsel %vm594, %v574, %v555
      %v599 = vsel %vm594, %v578, %v556
      %v600 = vsel %vm594, %v582, %v557
      %v601 = vsel %vm594, %v586, %v558
      %v602 = vsel %vm594, %v590, %v559
      %603 = vset.pattern.permute.xlu0 5
      %604 = vperm.xlu0 %603, %v370
      %v605 = vpop.permute.xlu0 %604
      %607 = vset.pattern.permute.xlu0 5
      %608 = vperm.xlu0 %607, %v374
      %v609 = vpop.permute.xlu0 %608
      %611 = vset.pattern.permute.xlu0 5
      %612 = vperm.xlu0 %611, %v378
      %v613 = vpop.permute.xlu0 %612
      %615 = vset.pattern.permute.xlu0 5
      %616 = vperm.xlu0 %615, %v382
      %v617 = vpop.permute.xlu0 %616
      %619 = vset.pattern.permute.xlu0 5
      %620 = vperm.xlu0 %619, %v386
      %v621 = vpop.permute.xlu0 %620
      %623 = vset.pattern.permute.xlu0 5
      %624 = vperm.xlu0 %623, %v390
      %v625 = vpop.permute.xlu0 %624
      %627 = vset.pattern.permute.xlu0 5
      %628 = vperm.xlu0 %627, %v394
      %v629 = vpop.permute.xlu0 %628
      %631 = vset.pattern.permute.xlu0 5
      %632 = vperm.xlu0 %631, %v398
      %v633 = vpop.permute.xlu0 %632
      %vm635 = vcmp.eq.s32.totalorder %v315, 5
      %v636 = vsel %vm635, 1, 0
      %vm637 = vcmp.eq.s32.totalorder %v636, 1
      %v638 = vsel %vm637, %v605, %v595
      %v639 = vsel %vm637, %v609, %v596
      %v640 = vsel %vm637, %v613, %v597
      %v641 = vsel %vm637, %v617, %v598
      %v642 = vsel %vm637, %v621, %v599
      %v643 = vsel %vm637, %v625, %v600
      %v644 = vsel %vm637, %v629, %v601
      %v645 = vsel %vm637, %v633, %v602
      %646 = vset.pattern.permute.xlu0 6
      %647 = vperm.xlu0 %646, %v370
      %v648 = vpop.permute.xlu0 %647
      %650 = vset.pattern.permute.xlu0 6
      %651 = vperm.xlu0 %650, %v374
      %v652 = vpop.permute.xlu0 %651
      %654 = vset.pattern.permute.xlu0 6
      %655 = vperm.xlu0 %654, %v378
      %v656 = vpop.permute.xlu0 %655
      %658 = vset.pattern.permute.xlu0 6
      %659 = vperm.xlu0 %658, %v382
      %v660 = vpop.permute.xlu0 %659
      %662 = vset.pattern.permute.xlu0 6
      %663 = vperm.xlu0 %662, %v386
      %v664 = vpop.permute.xlu0 %663
      %666 = vset.pattern.permute.xlu0 6
      %667 = vperm.xlu0 %666, %v390
      %v668 = vpop.permute.xlu0 %667
      %670 = vset.pattern.permute.xlu0 6
      %671 = vperm.xlu0 %670, %v394
      %v672 = vpop.permute.xlu0 %671
      %674 = vset.pattern.permute.xlu0 6
      %675 = vperm.xlu0 %674, %v398
      %v676 = vpop.permute.xlu0 %675
      %vm678 = vcmp.eq.s32.totalorder %v315, 6
      %v679 = vsel %vm678, 1, 0
      %vm680 = vcmp.eq.s32.totalorder %v679, 1
      %v681 = vsel %vm680, %v648, %v638
      %v682 = vsel %vm680, %v652, %v639
      %v683 = vsel %vm680, %v656, %v640
      %v684 = vsel %vm680, %v660, %v641
      %v685 = vsel %vm680, %v664, %v642
      %v686 = vsel %vm680, %v668, %v643
      %v687 = vsel %vm680, %v672, %v644
      %v688 = vsel %vm680, %v676, %v645
      %689 = vset.pattern.permute.xlu0 7
      %690 = vperm.xlu0 %689, %v370
      %v691 = vpop.permute.xlu0 %690
      %693 = vset.pattern.permute.xlu0 7
      %694 = vperm.xlu0 %693, %v374
      %v695 = vpop.permute.xlu0 %694
      %697 = vset.pattern.permute.xlu0 7
      %698 = vperm.xlu0 %697, %v378
      %v699 = vpop.permute.xlu0 %698
      %701 = vset.pattern.permute.xlu0 7
      %702 = vperm.xlu0 %701, %v382
      %v703 = vpop.permute.xlu0 %702
      %705 = vset.pattern.permute.xlu0 7
      %706 = vperm.xlu0 %705, %v386
      %v707 = vpop.permute.xlu0 %706
      %709 = vset.pattern.permute.xlu0 7
      %710 = vperm.xlu0 %709, %v390
      %v711 = vpop.permute.xlu0 %710
      %713 = vset.pattern.permute.xlu0 7
      %714 = vperm.xlu0 %713, %v394
      %v715 = vpop.permute.xlu0 %714
      %717 = vset.pattern.permute.xlu0 7
      %718 = vperm.xlu0 %717, %v398
      %v719 = vpop.permute.xlu0 %718
      %vm721 = vcmp.eq.s32.totalorder %v315, 7
      %v722 = vsel %vm721, 1, 0
      %vm723 = vcmp.eq.s32.totalorder %v722, 1
      %v724 = vsel %vm723, %v691, %v681
      %v725 = vsel %vm723, %v695, %v682
      %v726 = vsel %vm723, %v699, %v683
      %v727 = vsel %vm723, %v703, %v684
      %v728 = vsel %vm723, %v707, %v685
      %v729 = vsel %vm723, %v711, %v686
      %v730 = vsel %vm723, %v715, %v687
      %v731 = vsel %vm723, %v719, %v688
      %732 = vset.pattern.permute.xlu0 8
      %733 = vperm.xlu0 %732, %v370
      %v734 = vpop.permute.xlu0 %733
      %736 = vset.pattern.permute.xlu0 8
      %737 = vperm.xlu0 %736, %v374
      %v738 = vpop.permute.xlu0 %737
      %740 = vset.pattern.permute.xlu0 8
      %741 = vperm.xlu0 %740, %v378
      %v742 = vpop.permute.xlu0 %741
      %744 = vset.pattern.permute.xlu0 8
      %745 = vperm.xlu0 %744, %v382
      %v746 = vpop.permute.xlu0 %745
      %748 = vset.pattern.permute.xlu0 8
      %749 = vperm.xlu0 %748, %v386
      %v750 = vpop.permute.xlu0 %749
      %752 = vset.pattern.permute.xlu0 8
      %753 = vperm.xlu0 %752, %v390
      %v754 = vpop.permute.xlu0 %753
      %756 = vset.pattern.permute.xlu0 8
      %757 = vperm.xlu0 %756, %v394
      %v758 = vpop.permute.xlu0 %757
      %760 = vset.pattern.permute.xlu0 8
      %761 = vperm.xlu0 %760, %v398
      %v762 = vpop.permute.xlu0 %761
      %vm764 = vcmp.eq.s32.totalorder %v315, 8
      %v765 = vsel %vm764, 1, 0
      %vm766 = vcmp.eq.s32.totalorder %v765, 1
      %v767 = vsel %vm766, %v734, %v724
      %v768 = vsel %vm766, %v738, %v725
      %v769 = vsel %vm766, %v742, %v726
      %v770 = vsel %vm766, %v746, %v727
      %v771 = vsel %vm766, %v750, %v728
      %v772 = vsel %vm766, %v754, %v729
      %v773 = vsel %vm766, %v758, %v730
      %v774 = vsel %vm766, %v762, %v731
      %775 = vset.pattern.permute.xlu0 9
      %776 = vperm.xlu0 %775, %v370
      %v777 = vpop.permute.xlu0 %776
      %779 = vset.pattern.permute.xlu0 9
      %780 = vperm.xlu0 %779, %v374
      %v781 = vpop.permute.xlu0 %780
      %783 = vset.pattern.permute.xlu0 9
      %784 = vperm.xlu0 %783, %v378
      %v785 = vpop.permute.xlu0 %784
      %787 = vset.pattern.permute.xlu0 9
      %788 = vperm.xlu0 %787, %v382
      %v789 = vpop.permute.xlu0 %788
      %791 = vset.pattern.permute.xlu0 9
      %792 = vperm.xlu0 %791, %v386
      %v793 = vpop.permute.xlu0 %792
      %795 = vset.pattern.permute.xlu0 9
      %796 = vperm.xlu0 %795, %v390
      %v797 = vpop.permute.xlu0 %796
      %799 = vset.pattern.permute.xlu0 9
      %800 = vperm.xlu0 %799, %v394
      %v801 = vpop.permute.xlu0 %800
      %803 = vset.pattern.permute.xlu0 9
      %804 = vperm.xlu0 %803, %v398
      %v805 = vpop.permute.xlu0 %804
      %vm807 = vcmp.eq.s32.totalorder %v315, 9
      %v808 = vsel %vm807, 1, 0
      %vm809 = vcmp.eq.s32.totalorder %v808, 1
      %v810 = vsel %vm809, %v777, %v767
      %v811 = vsel %vm809, %v781, %v768
      %v812 = vsel %vm809, %v785, %v769
      %v813 = vsel %vm809, %v789, %v770
      %v814 = vsel %vm809, %v793, %v771
      %v815 = vsel %vm809, %v797, %v772
      %v816 = vsel %vm809, %v801, %v773
      %v817 = vsel %vm809, %v805, %v774
      %818 = vset.pattern.permute.xlu0 10
      %819 = vperm.xlu0 %818, %v370
      %v820 = vpop.permute.xlu0 %819
      %822 = vset.pattern.permute.xlu0 10
      %823 = vperm.xlu0 %822, %v374
      %v824 = vpop.permute.xlu0 %823
      %826 = vset.pattern.permute.xlu0 10
      %827 = vperm.xlu0 %826, %v378
      %v828 = vpop.permute.xlu0 %827
      %830 = vset.pattern.permute.xlu0 10
      %831 = vperm.xlu0 %830, %v382
      %v832 = vpop.permute.xlu0 %831
      %834 = vset.pattern.permute.xlu0 10
      %835 = vperm.xlu0 %834, %v386
      %v836 = vpop.permute.xlu0 %835
      %838 = vset.pattern.permute.xlu0 10
      %839 = vperm.xlu0 %838, %v390
      %v840 = vpop.permute.xlu0 %839
      %842 = vset.pattern.permute.xlu0 10
      %843 = vperm.xlu0 %842, %v394
      %v844 = vpop.permute.xlu0 %843
      %846 = vset.pattern.permute.xlu0 10
      %847 = vperm.xlu0 %846, %v398
      %v848 = vpop.permute.xlu0 %847
      %vm850 = vcmp.eq.s32.totalorder %v315, 10
      %v851 = vsel %vm850, 1, 0
      %vm852 = vcmp.eq.s32.totalorder %v851, 1
      %v853 = vsel %vm852, %v820, %v810
      %v854 = vsel %vm852, %v824, %v811
      %v855 = vsel %vm852, %v828, %v812
      %v856 = vsel %vm852, %v832, %v813
      %v857 = vsel %vm852, %v836, %v814
      %v858 = vsel %vm852, %v840, %v815
      %v859 = vsel %vm852, %v844, %v816
      %v860 = vsel %vm852, %v848, %v817
      %861 = vset.pattern.permute.xlu0 11
      %862 = vperm.xlu0 %861, %v370
      %v863 = vpop.permute.xlu0 %862
      %865 = vset.pattern.permute.xlu0 11
      %866 = vperm.xlu0 %865, %v374
      %v867 = vpop.permute.xlu0 %866
      %869 = vset.pattern.permute.xlu0 11
      %870 = vperm.xlu0 %869, %v378
      %v871 = vpop.permute.xlu0 %870
      %873 = vset.pattern.permute.xlu0 11
      %874 = vperm.xlu0 %873, %v382
      %v875 = vpop.permute.xlu0 %874
      %877 = vset.pattern.permute.xlu0 11
      %878 = vperm.xlu0 %877, %v386
      %v879 = vpop.permute.xlu0 %878
      %881 = vset.pattern.permute.xlu0 11
      %882 = vperm.xlu0 %881, %v390
      %v883 = vpop.permute.xlu0 %882
      %885 = vset.pattern.permute.xlu0 11
      %886 = vperm.xlu0 %885, %v394
      %v887 = vpop.permute.xlu0 %886
      %889 = vset.pattern.permute.xlu0 11
      %890 = vperm.xlu0 %889, %v398
      %v891 = vpop.permute.xlu0 %890
      %vm893 = vcmp.eq.s32.totalorder %v315, 11
      %v894 = vsel %vm893, 1, 0
      %vm895 = vcmp.eq.s32.totalorder %v894, 1
      %v896 = vsel %vm895, %v863, %v853
      %v897 = vsel %vm895, %v867, %v854
      %v898 = vsel %vm895, %v871, %v855
      %v899 = vsel %vm895, %v875, %v856
      %v900 = vsel %vm895, %v879, %v857
      %v901 = vsel %vm895, %v883, %v858
      %v902 = vsel %vm895, %v887, %v859
      %v903 = vsel %vm895, %v891, %v860
      %904 = vset.pattern.permute.xlu0 12
      %905 = vperm.xlu0 %904, %v370
      %v906 = vpop.permute.xlu0 %905
      %908 = vset.pattern.permute.xlu0 12
      %909 = vperm.xlu0 %908, %v374
      %v910 = vpop.permute.xlu0 %909
      %912 = vset.pattern.permute.xlu0 12
      %913 = vperm.xlu0 %912, %v378
      %v914 = vpop.permute.xlu0 %913
      %916 = vset.pattern.permute.xlu0 12
      %917 = vperm.xlu0 %916, %v382
      %v918 = vpop.permute.xlu0 %917
      %920 = vset.pattern.permute.xlu0 12
      %921 = vperm.xlu0 %920, %v386
      %v922 = vpop.permute.xlu0 %921
      %924 = vset.pattern.permute.xlu0 12
      %925 = vperm.xlu0 %924, %v390
      %v926 = vpop.permute.xlu0 %925
      %928 = vset.pattern.permute.xlu0 12
      %929 = vperm.xlu0 %928, %v394
      %v930 = vpop.permute.xlu0 %929
      %932 = vset.pattern.permute.xlu0 12
      %933 = vperm.xlu0 %932, %v398
      %v934 = vpop.permute.xlu0 %933
      %vm936 = vcmp.eq.s32.totalorder %v315, 12
      %v937 = vsel %vm936, 1, 0
      %vm938 = vcmp.eq.s32.totalorder %v937, 1
      %v939 = vsel %vm938, %v906, %v896
      %v940 = vsel %vm938, %v910, %v897
      %v941 = vsel %vm938, %v914, %v898
      %v942 = vsel %vm938, %v918, %v899
      %v943 = vsel %vm938, %v922, %v900
      %v944 = vsel %vm938, %v926, %v901
      %v945 = vsel %vm938, %v930, %v902
      %v946 = vsel %vm938, %v934, %v903
      %947 = vset.pattern.permute.xlu0 13
      %948 = vperm.xlu0 %947, %v370
      %v949 = vpop.permute.xlu0 %948
      %951 = vset.pattern.permute.xlu0 13
      %952 = vperm.xlu0 %951, %v374
      %v953 = vpop.permute.xlu0 %952
      %955 = vset.pattern.permute.xlu0 13
      %956 = vperm.xlu0 %955, %v378
      %v957 = vpop.permute.xlu0 %956
      %959 = vset.pattern.permute.xlu0 13
      %960 = vperm.xlu0 %959, %v382
      %v961 = vpop.permute.xlu0 %960
      %963 = vset.pattern.permute.xlu0 13
      %964 = vperm.xlu0 %963, %v386
      %v965 = vpop.permute.xlu0 %964
      %967 = vset.pattern.permute.xlu0 13
      %968 = vperm.xlu0 %967, %v390
      %v969 = vpop.permute.xlu0 %968
      %971 = vset.pattern.permute.xlu0 13
      %972 = vperm.xlu0 %971, %v394
      %v973 = vpop.permute.xlu0 %972
      %975 = vset.pattern.permute.xlu0 13
      %976 = vperm.xlu0 %975, %v398
      %v977 = vpop.permute.xlu0 %976
      %vm979 = vcmp.eq.s32.totalorder %v315, 13
      %v980 = vsel %vm979, 1, 0
      %vm981 = vcmp.eq.s32.totalorder %v980, 1
      %v982 = vsel %vm981, %v949, %v939
      %v983 = vsel %vm981, %v953, %v940
      %v984 = vsel %vm981, %v957, %v941
      %v985 = vsel %vm981, %v961, %v942
      %v986 = vsel %vm981, %v965, %v943
      %v987 = vsel %vm981, %v969, %v944
      %v988 = vsel %vm981, %v973, %v945
      %v989 = vsel %vm981, %v977, %v946
      %990 = vset.pattern.permute.xlu0 14
      %991 = vperm.xlu0 %990, %v370
      %v992 = vpop.permute.xlu0 %991
      %994 = vset.pattern.permute.xlu0 14
      %995 = vperm.xlu0 %994, %v374
      %v996 = vpop.permute.xlu0 %995
      %998 = vset.pattern.permute.xlu0 14
      %999 = vperm.xlu0 %998, %v378
      %v1000 = vpop.permute.xlu0 %999
      %1002 = vset.pattern.permute.xlu0 14
      %1003 = vperm.xlu0 %1002, %v382
      %v1004 = vpop.permute.xlu0 %1003
      %1006 = vset.pattern.permute.xlu0 14
      %1007 = vperm.xlu0 %1006, %v386
      %v1008 = vpop.permute.xlu0 %1007
      %1010 = vset.pattern.permute.xlu0 14
      %1011 = vperm.xlu0 %1010, %v390
      %v1012 = vpop.permute.xlu0 %1011
      %1014 = vset.pattern.permute.xlu0 14
      %1015 = vperm.xlu0 %1014, %v394
      %v1016 = vpop.permute.xlu0 %1015
      %1018 = vset.pattern.permute.xlu0 14
      %1019 = vperm.xlu0 %1018, %v398
      %v1020 = vpop.permute.xlu0 %1019
      %vm1022 = vcmp.eq.s32.totalorder %v315, 14
      %v1023 = vsel %vm1022, 1, 0
      %vm1024 = vcmp.eq.s32.totalorder %v1023, 1
      %v1025 = vsel %vm1024, %v992, %v982
      %v1026 = vsel %vm1024, %v996, %v983
      %v1027 = vsel %vm1024, %v1000, %v984
      %v1028 = vsel %vm1024, %v1004, %v985
      %v1029 = vsel %vm1024, %v1008, %v986
      %v1030 = vsel %vm1024, %v1012, %v987
      %v1031 = vsel %vm1024, %v1016, %v988
      %v1032 = vsel %vm1024, %v1020, %v989
      %1033 = vset.pattern.permute.xlu0 15
      %1034 = vperm.xlu0 %1033, %v370
      %v1035 = vpop.permute.xlu0 %1034
      %1037 = vset.pattern.permute.xlu0 15
      %1038 = vperm.xlu0 %1037, %v374
      %v1039 = vpop.permute.xlu0 %1038
      %1041 = vset.pattern.permute.xlu0 15
      %1042 = vperm.xlu0 %1041, %v378
      %v1043 = vpop.permute.xlu0 %1042
      %1045 = vset.pattern.permute.xlu0 15
      %1046 = vperm.xlu0 %1045, %v382
      %v1047 = vpop.permute.xlu0 %1046
      %1049 = vset.pattern.permute.xlu0 15
      %1050 = vperm.xlu0 %1049, %v386
      %v1051 = vpop.permute.xlu0 %1050
      %1053 = vset.pattern.permute.xlu0 15
      %1054 = vperm.xlu0 %1053, %v390
      %v1055 = vpop.permute.xlu0 %1054
      %1057 = vset.pattern.permute.xlu0 15
      %1058 = vperm.xlu0 %1057, %v394
      %v1059 = vpop.permute.xlu0 %1058
      %1061 = vset.pattern.permute.xlu0 15
      %1062 = vperm.xlu0 %1061, %v398
      %v1063 = vpop.permute.xlu0 %1062
      %vm1065 = vcmp.eq.s32.totalorder %v315, 15
      %v1066 = vsel %vm1065, 1, 0
      %vm1067 = vcmp.eq.s32.totalorder %v1066, 1
      %v1068 = vsel %vm1067, %v1035, %v1025
      %v1069 = vsel %vm1067, %v1039, %v1026
      %v1070 = vsel %vm1067, %v1043, %v1027
      %v1071 = vsel %vm1067, %v1047, %v1028
      %v1072 = vsel %vm1067, %v1051, %v1029
      %v1073 = vsel %vm1067, %v1055, %v1030
      %v1074 = vsel %vm1067, %v1059, %v1031
      %v1075 = vsel %vm1067, %v1063, %v1032
      %1076 = vset.pattern.permute.xlu0 16
      %1077 = vperm.xlu0 %1076, %v370
      %v1078 = vpop.permute.xlu0 %1077
      %1080 = vset.pattern.permute.xlu0 16
      %1081 = vperm.xlu0 %1080, %v374
      %v1082 = vpop.permute.xlu0 %1081
      %1084 = vset.pattern.permute.xlu0 16
      %1085 = vperm.xlu0 %1084, %v378
      %v1086 = vpop.permute.xlu0 %1085
      %1088 = vset.pattern.permute.xlu0 16
      %1089 = vperm.xlu0 %1088, %v382
      %v1090 = vpop.permute.xlu0 %1089
      %1092 = vset.pattern.permute.xlu0 16
      %1093 = vperm.xlu0 %1092, %v386
      %v1094 = vpop.permute.xlu0 %1093
      %1096 = vset.pattern.permute.xlu0 16
      %1097 = vperm.xlu0 %1096, %v390
      %v1098 = vpop.permute.xlu0 %1097
      %1100 = vset.pattern.permute.xlu0 16
      %1101 = vperm.xlu0 %1100, %v394
      %v1102 = vpop.permute.xlu0 %1101
      %1104 = vset.pattern.permute.xlu0 16
      %1105 = vperm.xlu0 %1104, %v398
      %v1106 = vpop.permute.xlu0 %1105
      %vm1108 = vcmp.eq.s32.totalorder %v315, 16
      %v1109 = vsel %vm1108, 1, 0
      %vm1110 = vcmp.eq.s32.totalorder %v1109, 1
      %v1111 = vsel %vm1110, %v1078, %v1068
      %v1112 = vsel %vm1110, %v1082, %v1069
      %v1113 = vsel %vm1110, %v1086, %v1070
      %v1114 = vsel %vm1110, %v1090, %v1071
      %v1115 = vsel %vm1110, %v1094, %v1072
      %v1116 = vsel %vm1110, %v1098, %v1073
      %v1117 = vsel %vm1110, %v1102, %v1074
      %v1118 = vsel %vm1110, %v1106, %v1075
      %1119 = vset.pattern.permute.xlu0 17
      %1120 = vperm.xlu0 %1119, %v370
      %v1121 = vpop.permute.xlu0 %1120
      %1123 = vset.pattern.permute.xlu0 17
      %1124 = vperm.xlu0 %1123, %v374
      %v1125 = vpop.permute.xlu0 %1124
      %1127 = vset.pattern.permute.xlu0 17
      %1128 = vperm.xlu0 %1127, %v378
      %v1129 = vpop.permute.xlu0 %1128
      %1131 = vset.pattern.permute.xlu0 17
      %1132 = vperm.xlu0 %1131, %v382
      %v1133 = vpop.permute.xlu0 %1132
      %1135 = vset.pattern.permute.xlu0 17
      %1136 = vperm.xlu0 %1135, %v386
      %v1137 = vpop.permute.xlu0 %1136
      %1139 = vset.pattern.permute.xlu0 17
      %1140 = vperm.xlu0 %1139, %v390
      %v1141 = vpop.permute.xlu0 %1140
      %1143 = vset.pattern.permute.xlu0 17
      %1144 = vperm.xlu0 %1143, %v394
      %v1145 = vpop.permute.xlu0 %1144
      %1147 = vset.pattern.permute.xlu0 17
      %1148 = vperm.xlu0 %1147, %v398
      %v1149 = vpop.permute.xlu0 %1148
      %vm1151 = vcmp.eq.s32.totalorder %v315, 17
      %v1152 = vsel %vm1151, 1, 0
      %vm1153 = vcmp.eq.s32.totalorder %v1152, 1
      %v1154 = vsel %vm1153, %v1121, %v1111
      %v1155 = vsel %vm1153, %v1125, %v1112
      %v1156 = vsel %vm1153, %v1129, %v1113
      %v1157 = vsel %vm1153, %v1133, %v1114
      %v1158 = vsel %vm1153, %v1137, %v1115
      %v1159 = vsel %vm1153, %v1141, %v1116
      %v1160 = vsel %vm1153, %v1145, %v1117
      %v1161 = vsel %vm1153, %v1149, %v1118
      %1162 = vset.pattern.permute.xlu0 18
      %1163 = vperm.xlu0 %1162, %v370
      %v1164 = vpop.permute.xlu0 %1163
      %1166 = vset.pattern.permute.xlu0 18
      %1167 = vperm.xlu0 %1166, %v374
      %v1168 = vpop.permute.xlu0 %1167
      %1170 = vset.pattern.permute.xlu0 18
      %1171 = vperm.xlu0 %1170, %v378
      %v1172 = vpop.permute.xlu0 %1171
      %1174 = vset.pattern.permute.xlu0 18
      %1175 = vperm.xlu0 %1174, %v382
      %v1176 = vpop.permute.xlu0 %1175
      %1178 = vset.pattern.permute.xlu0 18
      %1179 = vperm.xlu0 %1178, %v386
      %v1180 = vpop.permute.xlu0 %1179
      %1182 = vset.pattern.permute.xlu0 18
      %1183 = vperm.xlu0 %1182, %v390
      %v1184 = vpop.permute.xlu0 %1183
      %1186 = vset.pattern.permute.xlu0 18
      %1187 = vperm.xlu0 %1186, %v394
      %v1188 = vpop.permute.xlu0 %1187
      %1190 = vset.pattern.permute.xlu0 18
      %1191 = vperm.xlu0 %1190, %v398
      %v1192 = vpop.permute.xlu0 %1191
      %vm1194 = vcmp.eq.s32.totalorder %v315, 18
      %v1195 = vsel %vm1194, 1, 0
      %vm1196 = vcmp.eq.s32.totalorder %v1195, 1
      %v1197 = vsel %vm1196, %v1164, %v1154
      %v1198 = vsel %vm1196, %v1168, %v1155
      %v1199 = vsel %vm1196, %v1172, %v1156
      %v1200 = vsel %vm1196, %v1176, %v1157
      %v1201 = vsel %vm1196, %v1180, %v1158
      %v1202 = vsel %vm1196, %v1184, %v1159
      %v1203 = vsel %vm1196, %v1188, %v1160
      %v1204 = vsel %vm1196, %v1192, %v1161
      %1205 = vset.pattern.permute.xlu0 19
      %1206 = vperm.xlu0 %1205, %v370
      %v1207 = vpop.permute.xlu0 %1206
      %1209 = vset.pattern.permute.xlu0 19
      %1210 = vperm.xlu0 %1209, %v374
      %v1211 = vpop.permute.xlu0 %1210
      %1213 = vset.pattern.permute.xlu0 19
      %1214 = vperm.xlu0 %1213, %v378
      %v1215 = vpop.permute.xlu0 %1214
      %1217 = vset.pattern.permute.xlu0 19
      %1218 = vperm.xlu0 %1217, %v382
      %v1219 = vpop.permute.xlu0 %1218
      %1221 = vset.pattern.permute.xlu0 19
      %1222 = vperm.xlu0 %1221, %v386
      %v1223 = vpop.permute.xlu0 %1222
      %1225 = vset.pattern.permute.xlu0 19
      %1226 = vperm.xlu0 %1225, %v390
      %v1227 = vpop.permute.xlu0 %1226
      %1229 = vset.pattern.permute.xlu0 19
      %1230 = vperm.xlu0 %1229, %v394
      %v1231 = vpop.permute.xlu0 %1230
      %1233 = vset.pattern.permute.xlu0 19
      %1234 = vperm.xlu0 %1233, %v398
      %v1235 = vpop.permute.xlu0 %1234
      %vm1237 = vcmp.eq.s32.totalorder %v315, 19
      %v1238 = vsel %vm1237, 1, 0
      %vm1239 = vcmp.eq.s32.totalorder %v1238, 1
      %v1240 = vsel %vm1239, %v1207, %v1197
      %v1241 = vsel %vm1239, %v1211, %v1198
      %v1242 = vsel %vm1239, %v1215, %v1199
      %v1243 = vsel %vm1239, %v1219, %v1200
      %v1244 = vsel %vm1239, %v1223, %v1201
      %v1245 = vsel %vm1239, %v1227, %v1202
      %v1246 = vsel %vm1239, %v1231, %v1203
      %v1247 = vsel %vm1239, %v1235, %v1204
      %1248 = vset.pattern.permute.xlu0 20
      %1249 = vperm.xlu0 %1248, %v370
      %v1250 = vpop.permute.xlu0 %1249
      %1252 = vset.pattern.permute.xlu0 20
      %1253 = vperm.xlu0 %1252, %v374
      %v1254 = vpop.permute.xlu0 %1253
      %1256 = vset.pattern.permute.xlu0 20
      %1257 = vperm.xlu0 %1256, %v378
      %v1258 = vpop.permute.xlu0 %1257
      %1260 = vset.pattern.permute.xlu0 20
      %1261 = vperm.xlu0 %1260, %v382
      %v1262 = vpop.permute.xlu0 %1261
      %1264 = vset.pattern.permute.xlu0 20
      %1265 = vperm.xlu0 %1264, %v386
      %v1266 = vpop.permute.xlu0 %1265
      %1268 = vset.pattern.permute.xlu0 20
      %1269 = vperm.xlu0 %1268, %v390
      %v1270 = vpop.permute.xlu0 %1269
      %1272 = vset.pattern.permute.xlu0 20
      %1273 = vperm.xlu0 %1272, %v394
      %v1274 = vpop.permute.xlu0 %1273
      %1276 = vset.pattern.permute.xlu0 20
      %1277 = vperm.xlu0 %1276, %v398
      %v1278 = vpop.permute.xlu0 %1277
      %vm1280 = vcmp.eq.s32.totalorder %v315, 20
      %v1281 = vsel %vm1280, 1, 0
      %vm1282 = vcmp.eq.s32.totalorder %v1281, 1
      %v1283 = vsel %vm1282, %v1250, %v1240
      %v1284 = vsel %vm1282, %v1254, %v1241
      %v1285 = vsel %vm1282, %v1258, %v1242
      %v1286 = vsel %vm1282, %v1262, %v1243
      %v1287 = vsel %vm1282, %v1266, %v1244
      %v1288 = vsel %vm1282, %v1270, %v1245
      %v1289 = vsel %vm1282, %v1274, %v1246
      %v1290 = vsel %vm1282, %v1278, %v1247
      %1291 = vset.pattern.permute.xlu0 21
      %1292 = vperm.xlu0 %1291, %v370
      %v1293 = vpop.permute.xlu0 %1292
      %1295 = vset.pattern.permute.xlu0 21
      %1296 = vperm.xlu0 %1295, %v374
      %v1297 = vpop.permute.xlu0 %1296
      %1299 = vset.pattern.permute.xlu0 21
      %1300 = vperm.xlu0 %1299, %v378
      %v1301 = vpop.permute.xlu0 %1300
      %1303 = vset.pattern.permute.xlu0 21
      %1304 = vperm.xlu0 %1303, %v382
      %v1305 = vpop.permute.xlu0 %1304
      %1307 = vset.pattern.permute.xlu0 21
      %1308 = vperm.xlu0 %1307, %v386
      %v1309 = vpop.permute.xlu0 %1308
      %1311 = vset.pattern.permute.xlu0 21
      %1312 = vperm.xlu0 %1311, %v390
      %v1313 = vpop.permute.xlu0 %1312
      %1315 = vset.pattern.permute.xlu0 21
      %1316 = vperm.xlu0 %1315, %v394
      %v1317 = vpop.permute.xlu0 %1316
      %1319 = vset.pattern.permute.xlu0 21
      %1320 = vperm.xlu0 %1319, %v398
      %v1321 = vpop.permute.xlu0 %1320
      %vm1323 = vcmp.eq.s32.totalorder %v315, 21
      %v1324 = vsel %vm1323, 1, 0
      %vm1325 = vcmp.eq.s32.totalorder %v1324, 1
      %v1326 = vsel %vm1325, %v1293, %v1283
      %v1327 = vsel %vm1325, %v1297, %v1284
      %v1328 = vsel %vm1325, %v1301, %v1285
      %v1329 = vsel %vm1325, %v1305, %v1286
      %v1330 = vsel %vm1325, %v1309, %v1287
      %v1331 = vsel %vm1325, %v1313, %v1288
      %v1332 = vsel %vm1325, %v1317, %v1289
      %v1333 = vsel %vm1325, %v1321, %v1290
      %1334 = vset.pattern.permute.xlu0 22
      %1335 = vperm.xlu0 %1334, %v370
      %v1336 = vpop.permute.xlu0 %1335
      %1338 = vset.pattern.permute.xlu0 22
      %1339 = vperm.xlu0 %1338, %v374
      %v1340 = vpop.permute.xlu0 %1339
      %1342 = vset.pattern.permute.xlu0 22
      %1343 = vperm.xlu0 %1342, %v378
      %v1344 = vpop.permute.xlu0 %1343
      %1346 = vset.pattern.permute.xlu0 22
      %1347 = vperm.xlu0 %1346, %v382
      %v1348 = vpop.permute.xlu0 %1347
      %1350 = vset.pattern.permute.xlu0 22
      %1351 = vperm.xlu0 %1350, %v386
      %v1352 = vpop.permute.xlu0 %1351
      %1354 = vset.pattern.permute.xlu0 22
      %1355 = vperm.xlu0 %1354, %v390
      %v1356 = vpop.permute.xlu0 %1355
      %1358 = vset.pattern.permute.xlu0 22
      %1359 = vperm.xlu0 %1358, %v394
      %v1360 = vpop.permute.xlu0 %1359
      %1362 = vset.pattern.permute.xlu0 22
      %1363 = vperm.xlu0 %1362, %v398
      %v1364 = vpop.permute.xlu0 %1363
      %vm1366 = vcmp.eq.s32.totalorder %v315, 22
      %v1367 = vsel %vm1366, 1, 0
      %vm1368 = vcmp.eq.s32.totalorder %v1367, 1
      %v1369 = vsel %vm1368, %v1336, %v1326
      %v1370 = vsel %vm1368, %v1340, %v1327
      %v1371 = vsel %vm1368, %v1344, %v1328
      %v1372 = vsel %vm1368, %v1348, %v1329
      %v1373 = vsel %vm1368, %v1352, %v1330
      %v1374 = vsel %vm1368, %v1356, %v1331
      %v1375 = vsel %vm1368, %v1360, %v1332
      %v1376 = vsel %vm1368, %v1364, %v1333
      %1377 = vset.pattern.permute.xlu0 23
      %1378 = vperm.xlu0 %1377, %v370
      %v1379 = vpop.permute.xlu0 %1378
      %1381 = vset.pattern.permute.xlu0 23
      %1382 = vperm.xlu0 %1381, %v374
      %v1383 = vpop.permute.xlu0 %1382
      %1385 = vset.pattern.permute.xlu0 23
      %1386 = vperm.xlu0 %1385, %v378
      %v1387 = vpop.permute.xlu0 %1386
      %1389 = vset.pattern.permute.xlu0 23
      %1390 = vperm.xlu0 %1389, %v382
      %v1391 = vpop.permute.xlu0 %1390
      %1393 = vset.pattern.permute.xlu0 23
      %1394 = vperm.xlu0 %1393, %v386
      %v1395 = vpop.permute.xlu0 %1394
      %1397 = vset.pattern.permute.xlu0 23
      %1398 = vperm.xlu0 %1397, %v390
      %v1399 = vpop.permute.xlu0 %1398
      %1401 = vset.pattern.permute.xlu0 23
      %1402 = vperm.xlu0 %1401, %v394
      %v1403 = vpop.permute.xlu0 %1402
      %1405 = vset.pattern.permute.xlu0 23
      %1406 = vperm.xlu0 %1405, %v398
      %v1407 = vpop.permute.xlu0 %1406
      %vm1409 = vcmp.eq.s32.totalorder %v315, 23
      %v1410 = vsel %vm1409, 1, 0
      %vm1411 = vcmp.eq.s32.totalorder %v1410, 1
      %v1412 = vsel %vm1411, %v1379, %v1369
      %v1413 = vsel %vm1411, %v1383, %v1370
      %v1414 = vsel %vm1411, %v1387, %v1371
      %v1415 = vsel %vm1411, %v1391, %v1372
      %v1416 = vsel %vm1411, %v1395, %v1373
      %v1417 = vsel %vm1411, %v1399, %v1374
      %v1418 = vsel %vm1411, %v1403, %v1375
      %v1419 = vsel %vm1411, %v1407, %v1376
      %1420 = vset.pattern.permute.xlu0 24
      %1421 = vperm.xlu0 %1420, %v370
      %v1422 = vpop.permute.xlu0 %1421
      %1424 = vset.pattern.permute.xlu0 24
      %1425 = vperm.xlu0 %1424, %v374
      %v1426 = vpop.permute.xlu0 %1425
      %1428 = vset.pattern.permute.xlu0 24
      %1429 = vperm.xlu0 %1428, %v378
      %v1430 = vpop.permute.xlu0 %1429
      %1432 = vset.pattern.permute.xlu0 24
      %1433 = vperm.xlu0 %1432, %v382
      %v1434 = vpop.permute.xlu0 %1433
      %1436 = vset.pattern.permute.xlu0 24
      %1437 = vperm.xlu0 %1436, %v386
      %v1438 = vpop.permute.xlu0 %1437
      %1440 = vset.pattern.permute.xlu0 24
      %1441 = vperm.xlu0 %1440, %v390
      %v1442 = vpop.permute.xlu0 %1441
      %1444 = vset.pattern.permute.xlu0 24
      %1445 = vperm.xlu0 %1444, %v394
      %v1446 = vpop.permute.xlu0 %1445
      %1448 = vset.pattern.permute.xlu0 24
      %1449 = vperm.xlu0 %1448, %v398
      %v1450 = vpop.permute.xlu0 %1449
      %vm1452 = vcmp.eq.s32.totalorder %v315, 24
      %v1453 = vsel %vm1452, 1, 0
      %vm1454 = vcmp.eq.s32.totalorder %v1453, 1
      %v1455 = vsel %vm1454, %v1422, %v1412
      %v1456 = vsel %vm1454, %v1426, %v1413
      %v1457 = vsel %vm1454, %v1430, %v1414
      %v1458 = vsel %vm1454, %v1434, %v1415
      %v1459 = vsel %vm1454, %v1438, %v1416
      %v1460 = vsel %vm1454, %v1442, %v1417
      %v1461 = vsel %vm1454, %v1446, %v1418
      %v1462 = vsel %vm1454, %v1450, %v1419
      %1463 = vset.pattern.permute.xlu0 25
      %1464 = vperm.xlu0 %1463, %v370
      %v1465 = vpop.permute.xlu0 %1464
      %1467 = vset.pattern.permute.xlu0 25
      %1468 = vperm.xlu0 %1467, %v374
      %v1469 = vpop.permute.xlu0 %1468
      %1471 = vset.pattern.permute.xlu0 25
      %1472 = vperm.xlu0 %1471, %v378
      %v1473 = vpop.permute.xlu0 %1472
      %1475 = vset.pattern.permute.xlu0 25
      %1476 = vperm.xlu0 %1475, %v382
      %v1477 = vpop.permute.xlu0 %1476
      %1479 = vset.pattern.permute.xlu0 25
      %1480 = vperm.xlu0 %1479, %v386
      %v1481 = vpop.permute.xlu0 %1480
      %1483 = vset.pattern.permute.xlu0 25
      %1484 = vperm.xlu0 %1483, %v390
      %v1485 = vpop.permute.xlu0 %1484
      %1487 = vset.pattern.permute.xlu0 25
      %1488 = vperm.xlu0 %1487, %v394
      %v1489 = vpop.permute.xlu0 %1488
      %1491 = vset.pattern.permute.xlu0 25
      %1492 = vperm.xlu0 %1491, %v398
      %v1493 = vpop.permute.xlu0 %1492
      %vm1495 = vcmp.eq.s32.totalorder %v315, 25
      %v1496 = vsel %vm1495, 1, 0
      %vm1497 = vcmp.eq.s32.totalorder %v1496, 1
      %v1498 = vsel %vm1497, %v1465, %v1455
      %v1499 = vsel %vm1497, %v1469, %v1456
      %v1500 = vsel %vm1497, %v1473, %v1457
      %v1501 = vsel %vm1497, %v1477, %v1458
      %v1502 = vsel %vm1497, %v1481, %v1459
      %v1503 = vsel %vm1497, %v1485, %v1460
      %v1504 = vsel %vm1497, %v1489, %v1461
      %v1505 = vsel %vm1497, %v1493, %v1462
      %1506 = vset.pattern.permute.xlu0 26
      %1507 = vperm.xlu0 %1506, %v370
      %v1508 = vpop.permute.xlu0 %1507
      %1510 = vset.pattern.permute.xlu0 26
      %1511 = vperm.xlu0 %1510, %v374
      %v1512 = vpop.permute.xlu0 %1511
      %1514 = vset.pattern.permute.xlu0 26
      %1515 = vperm.xlu0 %1514, %v378
      %v1516 = vpop.permute.xlu0 %1515
      %1518 = vset.pattern.permute.xlu0 26
      %1519 = vperm.xlu0 %1518, %v382
      %v1520 = vpop.permute.xlu0 %1519
      %1522 = vset.pattern.permute.xlu0 26
      %1523 = vperm.xlu0 %1522, %v386
      %v1524 = vpop.permute.xlu0 %1523
      %1526 = vset.pattern.permute.xlu0 26
      %1527 = vperm.xlu0 %1526, %v390
      %v1528 = vpop.permute.xlu0 %1527
      %1530 = vset.pattern.permute.xlu0 26
      %1531 = vperm.xlu0 %1530, %v394
      %v1532 = vpop.permute.xlu0 %1531
      %1534 = vset.pattern.permute.xlu0 26
      %1535 = vperm.xlu0 %1534, %v398
      %v1536 = vpop.permute.xlu0 %1535
      %vm1538 = vcmp.eq.s32.totalorder %v315, 26
      %v1539 = vsel %vm1538, 1, 0
      %vm1540 = vcmp.eq.s32.totalorder %v1539, 1
      %v1541 = vsel %vm1540, %v1508, %v1498
      %v1542 = vsel %vm1540, %v1512, %v1499
      %v1543 = vsel %vm1540, %v1516, %v1500
      %v1544 = vsel %vm1540, %v1520, %v1501
      %v1545 = vsel %vm1540, %v1524, %v1502
      %v1546 = vsel %vm1540, %v1528, %v1503
      %v1547 = vsel %vm1540, %v1532, %v1504
      %v1548 = vsel %vm1540, %v1536, %v1505
      %1549 = vset.pattern.permute.xlu0 27
      %1550 = vperm.xlu0 %1549, %v370
      %v1551 = vpop.permute.xlu0 %1550
      %1553 = vset.pattern.permute.xlu0 27
      %1554 = vperm.xlu0 %1553, %v374
      %v1555 = vpop.permute.xlu0 %1554
      %1557 = vset.pattern.permute.xlu0 27
      %1558 = vperm.xlu0 %1557, %v378
      %v1559 = vpop.permute.xlu0 %1558
      %1561 = vset.pattern.permute.xlu0 27
      %1562 = vperm.xlu0 %1561, %v382
      %v1563 = vpop.permute.xlu0 %1562
      %1565 = vset.pattern.permute.xlu0 27
      %1566 = vperm.xlu0 %1565, %v386
      %v1567 = vpop.permute.xlu0 %1566
      %1569 = vset.pattern.permute.xlu0 27
      %1570 = vperm.xlu0 %1569, %v390
      %v1571 = vpop.permute.xlu0 %1570
      %1573 = vset.pattern.permute.xlu0 27
      %1574 = vperm.xlu0 %1573, %v394
      %v1575 = vpop.permute.xlu0 %1574
      %1577 = vset.pattern.permute.xlu0 27
      %1578 = vperm.xlu0 %1577, %v398
      %v1579 = vpop.permute.xlu0 %1578
      %vm1581 = vcmp.eq.s32.totalorder %v315, 27
      %v1582 = vsel %vm1581, 1, 0
      %vm1583 = vcmp.eq.s32.totalorder %v1582, 1
      %v1584 = vsel %vm1583, %v1551, %v1541
      %v1585 = vsel %vm1583, %v1555, %v1542
      %v1586 = vsel %vm1583, %v1559, %v1543
      %v1587 = vsel %vm1583, %v1563, %v1544
      %v1588 = vsel %vm1583, %v1567, %v1545
      %v1589 = vsel %vm1583, %v1571, %v1546
      %v1590 = vsel %vm1583, %v1575, %v1547
      %v1591 = vsel %vm1583, %v1579, %v1548
      %1592 = vset.pattern.permute.xlu0 28
      %1593 = vperm.xlu0 %1592, %v370
      %v1594 = vpop.permute.xlu0 %1593
      %1596 = vset.pattern.permute.xlu0 28
      %1597 = vperm.xlu0 %1596, %v374
      %v1598 = vpop.permute.xlu0 %1597
      %1600 = vset.pattern.permute.xlu0 28
      %1601 = vperm.xlu0 %1600, %v378
      %v1602 = vpop.permute.xlu0 %1601
      %1604 = vset.pattern.permute.xlu0 28
      %1605 = vperm.xlu0 %1604, %v382
      %v1606 = vpop.permute.xlu0 %1605
      %1608 = vset.pattern.permute.xlu0 28
      %1609 = vperm.xlu0 %1608, %v386
      %v1610 = vpop.permute.xlu0 %1609
      %1612 = vset.pattern.permute.xlu0 28
      %1613 = vperm.xlu0 %1612, %v390
      %v1614 = vpop.permute.xlu0 %1613
      %1616 = vset.pattern.permute.xlu0 28
      %1617 = vperm.xlu0 %1616, %v394
      %v1618 = vpop.permute.xlu0 %1617
      %1620 = vset.pattern.permute.xlu0 28
      %1621 = vperm.xlu0 %1620, %v398
      %v1622 = vpop.permute.xlu0 %1621
      %vm1624 = vcmp.eq.s32.totalorder %v315, 28
      %v1625 = vsel %vm1624, 1, 0
      %vm1626 = vcmp.eq.s32.totalorder %v1625, 1
      %v1627 = vsel %vm1626, %v1594, %v1584
      %v1628 = vsel %vm1626, %v1598, %v1585
      %v1629 = vsel %vm1626, %v1602, %v1586
      %v1630 = vsel %vm1626, %v1606, %v1587
      %v1631 = vsel %vm1626, %v1610, %v1588
      %v1632 = vsel %vm1626, %v1614, %v1589
      %v1633 = vsel %vm1626, %v1618, %v1590
      %v1634 = vsel %vm1626, %v1622, %v1591
      %1635 = vset.pattern.permute.xlu0 29
      %1636 = vperm.xlu0 %1635, %v370
      %v1637 = vpop.permute.xlu0 %1636
      %1639 = vset.pattern.permute.xlu0 29
      %1640 = vperm.xlu0 %1639, %v374
      %v1641 = vpop.permute.xlu0 %1640
      %1643 = vset.pattern.permute.xlu0 29
      %1644 = vperm.xlu0 %1643, %v378
      %v1645 = vpop.permute.xlu0 %1644
      %1647 = vset.pattern.permute.xlu0 29
      %1648 = vperm.xlu0 %1647, %v382
      %v1649 = vpop.permute.xlu0 %1648
      %1651 = vset.pattern.permute.xlu0 29
      %1652 = vperm.xlu0 %1651, %v386
      %v1653 = vpop.permute.xlu0 %1652
      %1655 = vset.pattern.permute.xlu0 29
      %1656 = vperm.xlu0 %1655, %v390
      %v1657 = vpop.permute.xlu0 %1656
      %1659 = vset.pattern.permute.xlu0 29
      %1660 = vperm.xlu0 %1659, %v394
      %v1661 = vpop.permute.xlu0 %1660
      %1663 = vset.pattern.permute.xlu0 29
      %1664 = vperm.xlu0 %1663, %v398
      %v1665 = vpop.permute.xlu0 %1664
      %vm1667 = vcmp.eq.s32.totalorder %v315, 29
      %v1668 = vsel %vm1667, 1, 0
      %vm1669 = vcmp.eq.s32.totalorder %v1668, 1
      %v1670 = vsel %vm1669, %v1637, %v1627
      %v1671 = vsel %vm1669, %v1641, %v1628
      %v1672 = vsel %vm1669, %v1645, %v1629
      %v1673 = vsel %vm1669, %v1649, %v1630
      %v1674 = vsel %vm1669, %v1653, %v1631
      %v1675 = vsel %vm1669, %v1657, %v1632
      %v1676 = vsel %vm1669, %v1661, %v1633
      %v1677 = vsel %vm1669, %v1665, %v1634
      %1678 = vset.pattern.permute.xlu0 30
      %1679 = vperm.xlu0 %1678, %v370
      %v1680 = vpop.permute.xlu0 %1679
      %1682 = vset.pattern.permute.xlu0 30
      %1683 = vperm.xlu0 %1682, %v374
      %v1684 = vpop.permute.xlu0 %1683
      %1686 = vset.pattern.permute.xlu0 30
      %1687 = vperm.xlu0 %1686, %v378
      %v1688 = vpop.permute.xlu0 %1687
      %1690 = vset.pattern.permute.xlu0 30
      %1691 = vperm.xlu0 %1690, %v382
      %v1692 = vpop.permute.xlu0 %1691
      %1694 = vset.pattern.permute.xlu0 30
      %1695 = vperm.xlu0 %1694, %v386
      %v1696 = vpop.permute.xlu0 %1695
      %1698 = vset.pattern.permute.xlu0 30
      %1699 = vperm.xlu0 %1698, %v390
      %v1700 = vpop.permute.xlu0 %1699
      %1702 = vset.pattern.permute.xlu0 30
      %1703 = vperm.xlu0 %1702, %v394
      %v1704 = vpop.permute.xlu0 %1703
      %1706 = vset.pattern.permute.xlu0 30
      %1707 = vperm.xlu0 %1706, %v398
      %v1708 = vpop.permute.xlu0 %1707
      %vm1710 = vcmp.eq.s32.totalorder %v315, 30
      %v1711 = vsel %vm1710, 1, 0
      %vm1712 = vcmp.eq.s32.totalorder %v1711, 1
      %v1713 = vsel %vm1712, %v1680, %v1670
      %v1714 = vsel %vm1712, %v1684, %v1671
      %v1715 = vsel %vm1712, %v1688, %v1672
      %v1716 = vsel %vm1712, %v1692, %v1673
      %v1717 = vsel %vm1712, %v1696, %v1674
      %v1718 = vsel %vm1712, %v1700, %v1675
      %v1719 = vsel %vm1712, %v1704, %v1676
      %v1720 = vsel %vm1712, %v1708, %v1677
      %1721 = vset.pattern.permute.xlu0 31
      %1722 = vperm.xlu0 %1721, %v370
      %v1723 = vpop.permute.xlu0 %1722
      %1725 = vset.pattern.permute.xlu0 31
      %1726 = vperm.xlu0 %1725, %v374
      %v1727 = vpop.permute.xlu0 %1726
      %1729 = vset.pattern.permute.xlu0 31
      %1730 = vperm.xlu0 %1729, %v378
      %v1731 = vpop.permute.xlu0 %1730
      %1733 = vset.pattern.permute.xlu0 31
      %1734 = vperm.xlu0 %1733, %v382
      %v1735 = vpop.permute.xlu0 %1734
      %1737 = vset.pattern.permute.xlu0 31
      %1738 = vperm.xlu0 %1737, %v386
      %v1739 = vpop.permute.xlu0 %1738
      %1741 = vset.pattern.permute.xlu0 31
      %1742 = vperm.xlu0 %1741, %v390
      %v1743 = vpop.permute.xlu0 %1742
      %1745 = vset.pattern.permute.xlu0 31
      %1746 = vperm.xlu0 %1745, %v394
      %v1747 = vpop.permute.xlu0 %1746
      %1749 = vset.pattern.permute.xlu0 31
      %1750 = vperm.xlu0 %1749, %v398
      %v1751 = vpop.permute.xlu0 %1750
      %vm1753 = vcmp.eq.s32.totalorder %v315, 31
      %v1754 = vsel %vm1753, 1, 0
      %vm1755 = vcmp.eq.s32.totalorder %v1754, 1
      %v1756 = vsel %vm1755, %v1723, %v1713
      %v1757 = vsel %vm1755, %v1727, %v1714
      %v1758 = vsel %vm1755, %v1731, %v1715
      %v1759 = vsel %vm1755, %v1735, %v1716
      %v1760 = vsel %vm1755, %v1739, %v1717
      %v1761 = vsel %vm1755, %v1743, %v1718
      %v1762 = vsel %vm1755, %v1747, %v1719
      %v1763 = vsel %vm1755, %v1751, %v1720
      %vm1764 = vcmask 130048
      %1765 = vst.msk [vmem:[#allocation5] sm:$0xff] %vm1764, %v1756
      %1766 = vst.msk [vmem:[#allocation5 + $0x8] sm:$0xff] %vm1764, %v1757
      %1767 = vst.msk [vmem:[#allocation5 + $0x10] sm:$0xff] %vm1764, %v1758
      %1768 = vst.msk [vmem:[#allocation5 + $0x18] sm:$0xff] %vm1764, %v1759
      %1769 = vst.msk [vmem:[#allocation5 + $0x20] sm:$0xff] %vm1764, %v1760
      %1770 = vst.msk [vmem:[#allocation5 + $0x28] sm:$0xff] %vm1764, %v1761
      %1771 = vst.msk [vmem:[#allocation5 + $0x30] sm:$0xff] %vm1764, %v1762
      %1772 = vst.msk [vmem:[#allocation5 + $0x38] sm:$0xff] %vm1764, %v1763
    $region21: #{tpu_custom_call.1} parent=1 // pred_fallthru
      _
    // Predicated region
    $region22: #{tpu_custom_call.1} parent=1 // pred_check
      _
    $region23: #{tpu_custom_call.1} parent=1 // pred_check_branch
      %1774 = sbr.rel (0) target = $region25
    $region24: #{tpu_custom_call.1} parent=1 // pred_region
      %s1776 = ssub.s32 1024, 1024
      %1777 = vsyncadd [#allocation4], %s1776
      %s1778 = sshll.u32 [#allocation5], 4
      %s1779 = int_to_ptr.vmem [resolvable:$true] %s1778
      %1784 = dma.vmem_to_hbm [thread:$0]  %s1779, 1024, %s1, [#allocation4], 128, 128, 8
    $region25: #{tpu_custom_call.1} parent=1 // pred_fallthru
      _
    // Predicated region
    $region26: #{tpu_custom_call.1} parent=1 // pred_check
      _
    $region27: #{tpu_custom_call.1} parent=1 // pred_check_branch
      %1786 = sbr.rel (0) target = $region29
    $region28: #{tpu_custom_call.1} parent=1 // pred_region
      %1787 = dma.done [#allocation4], 1024
    $region29: #{tpu_custom_call.1} parent=1 // pred_fallthru
      _
    %1788 = vsyncpa [#allocation3], 1
    %1789 = vsyncpa [#allocation4], 1

</llo_original>
